<compile_context>
chip_gen: v7x
topology: tpu7x:2x2x1
jax: 0.10.0
libtpu: 0.0.40
codegen_flags: <defaults>
</compile_context>

<pallas_src>
import numpy as np

import jax
import jax.numpy as jnp
from jax.experimental import pallas as pl
from jax.experimental.pallas import tpu as pltpu


def _round_up(x, m):
    return (x + m - 1) // m * m


# ------------------------------ Pallas kernel -------------------------------
def _conv_ds_ln_kernel(x_ref, we_ref, wo_ref, g_ref, b_ref, o_ref):
    """Fused stride-2 3x3 conv (6 MXU matmuls) + LayerNorm for one row tile.

    x_ref : (1, 1, 2, 2, th+1, Wp2p, Cinp) bf16  parity slabs of the padded
            input for one (batch, row-tile); the row dim carries a 1-row halo.
    we_ref: (3, Cinp, 2*Cout) bf16   even-column taps: [dy] = [W(dy,0)|W(dy,2)]
    wo_ref: (3, Cinp,   Cout) bf16   odd-column taps:  [dy] =  W(dy,1)
    g_ref, b_ref: (1, Cout) f32      LayerNorm gamma / beta
    o_ref : (1, 1, th, Wo, Cout)     normalized output tile (bf16 by default)
    """
    th, wo, cout = o_ref.shape[2], o_ref.shape[3], o_ref.shape[4]
    wp2p, cinp = x_ref.shape[5], x_ref.shape[6]
    m = th * wp2p

    acc_e = jnp.zeros((m, 2 * cout), jnp.float32)   # taps with dx in {0, 2}
    acc_o = jnp.zeros((m, cout), jnp.float32)       # taps with dx == 1
    for dy in range(3):                             # static unroll: 3 row taps
        rp, ro = dy % 2, dy // 2                    # row parity / row offset
        # Leading-dim slices + layout-preserving reshape (Wp2p % 16 == 0,
        # Cinp % 128 == 0) -> no per-tap VMEM relayout copies for the MXU LHS.
        lhs_e = x_ref[0, 0, rp, 0, ro:ro + th, :, :].reshape(m, cinp)
        lhs_o = x_ref[0, 0, rp, 1, ro:ro + th, :, :].reshape(m, cinp)
        acc_e = acc_e + jnp.dot(lhs_e, we_ref[dy],
                                preferred_element_type=jnp.float32)
        acc_o = acc_o + jnp.dot(lhs_o, wo_ref[dy],
                                preferred_element_type=jnp.float32)

    acc_e = acc_e.reshape(th, wp2p, 2 * cout)
    acc_o = acc_o.reshape(th, wp2p, cout)
    # conv[oh, ow] = even-col taps (dx=0) + odd-col taps (dx=1)
    #               + even-col taps shifted by one slab column (dx=2)
    conv = (acc_e[:, :wo, :cout] + acc_o[:, :wo, :]
            + acc_e[:, 1:wo + 1, cout:])

    # Fused single-pass LayerNorm (eps = 1e-5, as nn.LayerNorm), math in f32.
    s1 = jnp.sum(conv, axis=-1, keepdims=True)
    s2 = jnp.sum(conv * conv, axis=-1, keepdims=True)
    mean = s1 * (1.0 / cout)
    var = jnp.maximum(s2 * (1.0 / cout) - mean * mean, 0.0)
    y = (conv - mean) * jax.lax.rsqrt(var + 1e-5) * g_ref[...] + b_ref[...]
    o_ref[0, 0] = y.astype(o_ref.dtype)


# --------------------------------- wrapper ----------------------------------
def conv_downsampler(x_nhwc, w_oihw, gamma, beta, *, out_dtype=jnp.bfloat16):
    """x: (B, H, W, C) NHWC; w: (2C, C, 3, 3) OIHW; returns (B, H//2, W//2, 2C).

    out_dtype defaults to bf16 (halves store traffic); pass x_nhwc.dtype to
    keep the module's exact output dtype.  LayerNorm math is always f32.
    """
    B, H, W, cin = x_nhwc.shape
    cout = w_oihw.shape[0]
    assert H % 2 == 0 and W % 2 == 0, "even spatial dims expected"
    Ho, Wo = H // 2, W // 2

    cinp = _round_up(cin, 128)       # lane-dense matmul K (pads zero channels)
    wp2p = _round_up(Wo + 1, 16)     # sublane-dense slab width (bf16 tiling)

    # Output-row tile: th*Wo targets a few hundred rows; th divides Ho exactly.
    th = max(1, min(Ho, 512 // max(Wo, 1)))
    while Ho % th:
        th -= 1
    nt = Ho // th

    # --- wrapper relayout (one fused XLA pass over the input) ----------------
    # pad=1 spatially, zero-pad Cin -> Cinp, split into 2x2 parity slabs,
    # zero-pad slab width -> Wp2p, cast bf16.  No im2col duplication; only the
    # 1-row halo per row tile is duplicated below (~(th+1)/th extra bytes).
    # TODO(synk): for strictly mem-bound shapes this relayout could be replaced
    # by in-kernel strided DMAs of the 4 parity views from an ANY-space ref.
    xp = jnp.pad(x_nhwc, ((0, 0), (1, 1), (1, 1), (0, cinp - cin)))
    xpar = xp.reshape(B, Ho + 1, 2, Wo + 1, 2, cinp).transpose(0, 2, 4, 1, 3, 5)
    xpar = jnp.pad(xpar, ((0, 0),) * 4 + ((0, wp2p - (Wo + 1)), (0, 0)))
    xpar = xpar.astype(jnp.bfloat16)          # (B, 2, 2, Ho+1, Wp2p, Cinp)
    if nt == 1:
        xt = xpar[:, None]                    # (B, 1, 2, 2, Ho+1, Wp2p, Cinp)
    else:
        ridx = jnp.arange(nt)[:, None] * th + jnp.arange(th + 1)[None, :]
        xt = xpar[:, :, :, ridx].transpose(0, 3, 1, 2, 4, 5, 6)

    # Weights: (Cout, Cin, 3, 3) -> per-row-tap (Cinp, N) matrices, bf16.
    wt = jnp.transpose(w_oihw, (2, 3, 1, 0))                  # (3, 3, Cin, Cout)
    wt = jnp.pad(wt, ((0, 0), (0, 0), (0, cinp - cin), (0, 0)))
    w_even = jnp.concatenate([wt[:, 0], wt[:, 2]], axis=-1)   # (3, Cinp, 2Cout)
    w_odd = wt[:, 1]                                          # (3, Cinp,  Cout)
    w_even = w_even.astype(jnp.bfloat16)
    w_odd = w_odd.astype(jnp.bfloat16)
    g2 = gamma.reshape(1, cout).astype(jnp.float32)
    b2 = beta.reshape(1, cout).astype(jnp.float32)

    # VMEM budget: double-buffered in/out blocks + weights + f32 accumulators.
    out_itemsize = np.dtype(out_dtype).itemsize
    in_blk = 4 * (th + 1) * wp2p * cinp * 2
    out_blk = th * Wo * cout * out_itemsize
    w_bytes = 3 * cinp * 3 * cout * 2
    acc_bytes = th * wp2p * 3 * cout * 4 + th * Wo * cout * 4
    vmem_limit = int(min(64 * 2**20,
                         max(32 * 2**20,
                             2 * (in_blk + out_blk + w_bytes) + 3 * acc_bytes)))

    out = pl.pallas_call(
        _conv_ds_ln_kernel,
        out_shape=jax.ShapeDtypeStruct((B, nt, th, Wo, cout), out_dtype),
        grid=(B, nt),
        in_specs=[
            pl.BlockSpec((1, 1, 2, 2, th + 1, wp2p, cinp),
                         lambda b, m: (b, m, 0, 0, 0, 0, 0)),
            pl.BlockSpec((3, cinp, 2 * cout), lambda b, m: (0, 0, 0)),
            pl.BlockSpec((3, cinp, cout), lambda b, m: (0, 0, 0)),
            pl.BlockSpec((1, cout), lambda b, m: (0, 0)),
            pl.BlockSpec((1, cout), lambda b, m: (0, 0)),
        ],
        out_specs=pl.BlockSpec((1, 1, th, Wo, cout),
                               lambda b, m: (b, m, 0, 0, 0)),
        compiler_params=pltpu.CompilerParams(
            dimension_semantics=("parallel", "parallel"),
            vmem_limit_bytes=vmem_limit),
    )(xt, w_even, w_odd, g2, b2)
    return out.reshape(B, Ho, Wo, cout)


# ------------------------------ pure-JAX reference ---------------------------
def _reference(x_nhwc, w_oihw, gamma, beta):
    xn = jnp.transpose(x_nhwc, (0, 3, 1, 2))
    y = jax.lax.conv_general_dilated(
        xn, w_oihw, window_strides=(2, 2), padding=((1, 1), (1, 1)),
        dimension_numbers=("NCHW", "OIHW", "NCHW"))
    y = jnp.transpose(y, (0, 2, 3, 1))
    mean = jnp.mean(y, axis=-1, keepdims=True)
    var = jnp.mean((y - mean) ** 2, axis=-1, keepdims=True)
    return (y - mean) * jax.lax.rsqrt(var + 1e-5) * gamma + beta


# ---------------------------------- main -------------------------------------
if __name__ == "__main__":
    key = jax.random.PRNGKey(0)
    kx, kw = jax.random.split(key)
    B, H, W, dim = 2, 16, 16, 64                 # NHWC, as the module's forward
    x = jax.random.normal(kx, (B, H, W, dim), jnp.float32)
    w = 0.05 * jax.random.normal(kw, (2 * dim, dim, 3, 3), jnp.float32)
    gamma = jnp.ones((2 * dim,), jnp.float32)
    beta = jnp.zeros((2 * dim,), jnp.float32)

    fwd = jax.jit(conv_downsampler)
    out = jax.block_until_ready(fwd(x, w, gamma, beta))
    assert out.shape == (B, H // 2, W // 2, 2 * dim)
    out_f32 = out.astype(jnp.float32)
    assert bool(jnp.all(jnp.isfinite(out_f32)))

    ref = _reference(x, w, gamma, beta)
    err = float(jnp.max(jnp.abs(out_f32 - ref)))
    # bf16 MXU operands + bf16 output writeback tolerance.
    assert err < 7.5e-2, f"max abs err vs reference: {err}"
    print("KERNEL_OK")
</pallas_src>

<mosaic_0001>
module attributes {stable_mosaic.version = 11 : i64} {
  func.func @_conv_ds_ln_kernel(%arg0: i32, %arg1: i32, %arg2: memref<1x1x2x2x9x16x128xbf16, #tpu.memory_space<vmem>>, %arg3: memref<3x128x256xbf16, #tpu.memory_space<vmem>>, %arg4: memref<3x128x128xbf16, #tpu.memory_space<vmem>>, %arg5: memref<1x128xf32, #tpu.memory_space<vmem>>, %arg6: memref<1x128xf32, #tpu.memory_space<vmem>>, %arg7: memref<1x1x8x8x128xbf16, #tpu.memory_space<vmem>>) attributes {dimension_semantics = [#tpu.dimension_semantics<parallel>, #tpu.dimension_semantics<parallel>], iteration_bounds = array<i64: 2, 1>, scalar_prefetch = 0 : i64, scratch_operands = 0 : i64, tpu.core_type = #tpu.core_type<tc>, window_params = [{transform_indices = @transform_0, window_bounds = array<i64: 1, 1, 2, 2, 9, 16, 128>}, {pipeline_mode = #tpu.pipeline_mode<synchronous>, transform_indices = @transform_1, window_bounds = array<i64: 3, 128, 256>}, {pipeline_mode = #tpu.pipeline_mode<synchronous>, transform_indices = @transform_2, window_bounds = array<i64: 3, 128, 128>}, {pipeline_mode = #tpu.pipeline_mode<synchronous>, transform_indices = @transform_3, window_bounds = array<i64: 1, 128>}, {pipeline_mode = #tpu.pipeline_mode<synchronous>, transform_indices = @transform_4, window_bounds = array<i64: 1, 128>}, {transform_indices = @transform_5, window_bounds = array<i64: 1, 1, 8, 8, 128>}]} {
    %cst = arith.constant 0.000000e+00 : f32
    %0 = vector.broadcast %cst : f32 to vector<128x256xf32>
    %cst_0 = arith.constant 0.000000e+00 : f32
    %1 = vector.broadcast %cst_0 : f32 to vector<128x128xf32>
    %c0 = arith.constant 0 : index
    %c0_1 = arith.constant 0 : index
    %c0_2 = arith.constant 0 : index
    %c0_3 = arith.constant 0 : index
    %c0_4 = arith.constant 0 : index
    %c0_5 = arith.constant 0 : index
    %c0_6 = arith.constant 0 : index
    %2 = vector.load %arg2[%c0, %c0_1, %c0_2, %c0_3, %c0_4, %c0_5, %c0_6] : memref<1x1x2x2x9x16x128xbf16, #tpu.memory_space<vmem>>, vector<1x1x1x1x8x16x128xbf16>
    %3 = vector.shape_cast %2 : vector<1x1x1x1x8x16x128xbf16> to vector<8x16x128xbf16>
    %4 = vector.shape_cast %3 : vector<8x16x128xbf16> to vector<128x128xbf16>
    %c0_7 = arith.constant 0 : index
    %c0_8 = arith.constant 0 : index
    %c0_9 = arith.constant 0 : index
    %c1 = arith.constant 1 : index
    %c0_10 = arith.constant 0 : index
    %c0_11 = arith.constant 0 : index
    %c0_12 = arith.constant 0 : index
    %5 = vector.load %arg2[%c0_7, %c0_8, %c0_9, %c1, %c0_10, %c0_11, %c0_12] : memref<1x1x2x2x9x16x128xbf16, #tpu.memory_space<vmem>>, vector<1x1x1x1x8x16x128xbf16>
    %6 = vector.shape_cast %5 : vector<1x1x1x1x8x16x128xbf16> to vector<8x16x128xbf16>
    %7 = vector.shape_cast %6 : vector<8x16x128xbf16> to vector<128x128xbf16>
    %c0_13 = arith.constant 0 : index
    %c0_14 = arith.constant 0 : index
    %c0_15 = arith.constant 0 : index
    %8 = vector.load %arg3[%c0_13, %c0_14, %c0_15] : memref<3x128x256xbf16, #tpu.memory_space<vmem>>, vector<1x128x256xbf16>
    %9 = vector.shape_cast %8 : vector<1x128x256xbf16> to vector<128x256xbf16>
    %cst_16 = arith.constant dense<0.000000e+00> : vector<128x256xf32>
    %10 = tpu.matmul %4, %9, %cst_16 {dimension_numbers = #tpu.dot_dimension_numbers<[1], [0], [0], [1], [0, 0, 1, 1], [], []>} : vector<128x128xbf16>, vector<128x256xbf16>, vector<128x256xf32> -> vector<128x256xf32>
    %11 = arith.addf %0, %10 : vector<128x256xf32>
    %c0_17 = arith.constant 0 : index
    %c0_18 = arith.constant 0 : index
    %c0_19 = arith.constant 0 : index
    %12 = vector.load %arg4[%c0_17, %c0_18, %c0_19] : memref<3x128x128xbf16, #tpu.memory_space<vmem>>, vector<1x128x128xbf16>
    %13 = vector.shape_cast %12 : vector<1x128x128xbf16> to vector<128x128xbf16>
    %cst_20 = arith.constant dense<0.000000e+00> : vector<128x128xf32>
    %14 = tpu.matmul %7, %13, %cst_20 {dimension_numbers = #tpu.dot_dimension_numbers<[1], [0], [0], [1], [0, 0, 1, 1], [], []>} : vector<128x128xbf16>, vector<128x128xbf16>, vector<128x128xf32> -> vector<128x128xf32>
    %15 = arith.addf %1, %14 : vector<128x128xf32>
    %c0_21 = arith.constant 0 : index
    %c0_22 = arith.constant 0 : index
    %c1_23 = arith.constant 1 : index
    %c0_24 = arith.constant 0 : index
    %c0_25 = arith.constant 0 : index
    %c0_26 = arith.constant 0 : index
    %c0_27 = arith.constant 0 : index
    %16 = vector.load %arg2[%c0_21, %c0_22, %c1_23, %c0_24, %c0_25, %c0_26, %c0_27] : memref<1x1x2x2x9x16x128xbf16, #tpu.memory_space<vmem>>, vector<1x1x1x1x8x16x128xbf16>
    %17 = vector.shape_cast %16 : vector<1x1x1x1x8x16x128xbf16> to vector<8x16x128xbf16>
    %18 = vector.shape_cast %17 : vector<8x16x128xbf16> to vector<128x128xbf16>
    %c0_28 = arith.constant 0 : index
    %c0_29 = arith.constant 0 : index
    %c1_30 = arith.constant 1 : index
    %c1_31 = arith.constant 1 : index
    %c0_32 = arith.constant 0 : index
    %c0_33 = arith.constant 0 : index
    %c0_34 = arith.constant 0 : index
    %19 = vector.load %arg2[%c0_28, %c0_29, %c1_30, %c1_31, %c0_32, %c0_33, %c0_34] : memref<1x1x2x2x9x16x128xbf16, #tpu.memory_space<vmem>>, vector<1x1x1x1x8x16x128xbf16>
    %20 = vector.shape_cast %19 : vector<1x1x1x1x8x16x128xbf16> to vector<8x16x128xbf16>
    %21 = vector.shape_cast %20 : vector<8x16x128xbf16> to vector<128x128xbf16>
    %c1_35 = arith.constant 1 : index
    %c0_36 = arith.constant 0 : index
    %c0_37 = arith.constant 0 : index
    %22 = vector.load %arg3[%c1_35, %c0_36, %c0_37] : memref<3x128x256xbf16, #tpu.memory_space<vmem>>, vector<1x128x256xbf16>
    %23 = vector.shape_cast %22 : vector<1x128x256xbf16> to vector<128x256xbf16>
    %cst_38 = arith.constant dense<0.000000e+00> : vector<128x256xf32>
    %24 = tpu.matmul %18, %23, %cst_38 {dimension_numbers = #tpu.dot_dimension_numbers<[1], [0], [0], [1], [0, 0, 1, 1], [], []>} : vector<128x128xbf16>, vector<128x256xbf16>, vector<128x256xf32> -> vector<128x256xf32>
    %25 = arith.addf %11, %24 : vector<128x256xf32>
    %c1_39 = arith.constant 1 : index
    %c0_40 = arith.constant 0 : index
    %c0_41 = arith.constant 0 : index
    %26 = vector.load %arg4[%c1_39, %c0_40, %c0_41] : memref<3x128x128xbf16, #tpu.memory_space<vmem>>, vector<1x128x128xbf16>
    %27 = vector.shape_cast %26 : vector<1x128x128xbf16> to vector<128x128xbf16>
    %cst_42 = arith.constant dense<0.000000e+00> : vector<128x128xf32>
    %28 = tpu.matmul %21, %27, %cst_42 {dimension_numbers = #tpu.dot_dimension_numbers<[1], [0], [0], [1], [0, 0, 1, 1], [], []>} : vector<128x128xbf16>, vector<128x128xbf16>, vector<128x128xf32> -> vector<128x128xf32>
    %29 = arith.addf %15, %28 : vector<128x128xf32>
    %c0_43 = arith.constant 0 : index
    %c0_44 = arith.constant 0 : index
    %c0_45 = arith.constant 0 : index
    %c0_46 = arith.constant 0 : index
    %c1_47 = arith.constant 1 : index
    %c0_48 = arith.constant 0 : index
    %c0_49 = arith.constant 0 : index
    %30 = vector.load %arg2[%c0_43, %c0_44, %c0_45, %c0_46, %c1_47, %c0_48, %c0_49] : memref<1x1x2x2x9x16x128xbf16, #tpu.memory_space<vmem>>, vector<1x1x1x1x8x16x128xbf16>
    %31 = vector.shape_cast %30 : vector<1x1x1x1x8x16x128xbf16> to vector<8x16x128xbf16>
    %32 = vector.shape_cast %31 : vector<8x16x128xbf16> to vector<128x128xbf16>
    %c0_50 = arith.constant 0 : index
    %c0_51 = arith.constant 0 : index
    %c0_52 = arith.constant 0 : index
    %c1_53 = arith.constant 1 : index
    %c1_54 = arith.constant 1 : index
    %c0_55 = arith.constant 0 : index
    %c0_56 = arith.constant 0 : index
    %33 = vector.load %arg2[%c0_50, %c0_51, %c0_52, %c1_53, %c1_54, %c0_55, %c0_56] : memref<1x1x2x2x9x16x128xbf16, #tpu.memory_space<vmem>>, vector<1x1x1x1x8x16x128xbf16>
    %34 = vector.shape_cast %33 : vector<1x1x1x1x8x16x128xbf16> to vector<8x16x128xbf16>
    %35 = vector.shape_cast %34 : vector<8x16x128xbf16> to vector<128x128xbf16>
    %c2 = arith.constant 2 : index
    %c0_57 = arith.constant 0 : index
    %c0_58 = arith.constant 0 : index
    %36 = vector.load %arg3[%c2, %c0_57, %c0_58] : memref<3x128x256xbf16, #tpu.memory_space<vmem>>, vector<1x128x256xbf16>
    %37 = vector.shape_cast %36 : vector<1x128x256xbf16> to vector<128x256xbf16>
    %cst_59 = arith.constant dense<0.000000e+00> : vector<128x256xf32>
    %38 = tpu.matmul %32, %37, %cst_59 {dimension_numbers = #tpu.dot_dimension_numbers<[1], [0], [0], [1], [0, 0, 1, 1], [], []>} : vector<128x128xbf16>, vector<128x256xbf16>, vector<128x256xf32> -> vector<128x256xf32>
    %39 = arith.addf %25, %38 : vector<128x256xf32>
    %c2_60 = arith.constant 2 : index
    %c0_61 = arith.constant 0 : index
    %c0_62 = arith.constant 0 : index
    %40 = vector.load %arg4[%c2_60, %c0_61, %c0_62] : memref<3x128x128xbf16, #tpu.memory_space<vmem>>, vector<1x128x128xbf16>
    %41 = vector.shape_cast %40 : vector<1x128x128xbf16> to vector<128x128xbf16>
    %cst_63 = arith.constant dense<0.000000e+00> : vector<128x128xf32>
    %42 = tpu.matmul %35, %41, %cst_63 {dimension_numbers = #tpu.dot_dimension_numbers<[1], [0], [0], [1], [0, 0, 1, 1], [], []>} : vector<128x128xbf16>, vector<128x128xbf16>, vector<128x128xf32> -> vector<128x128xf32>
    %43 = arith.addf %29, %42 : vector<128x128xf32>
    %44 = vector.shape_cast %39 : vector<128x256xf32> to vector<8x16x256xf32>
    %45 = vector.shape_cast %43 : vector<128x128xf32> to vector<8x16x128xf32>
    %46 = vector.extract_strided_slice %44 {offsets = [0, 0, 0], sizes = [8, 8, 128], strides = [1, 1, 1]} : vector<8x16x256xf32> to vector<8x8x128xf32>
    %47 = vector.extract_strided_slice %45 {offsets = [0, 0, 0], sizes = [8, 8, 128], strides = [1, 1, 1]} : vector<8x16x128xf32> to vector<8x8x128xf32>
    %48 = arith.addf %46, %47 : vector<8x8x128xf32>
    %49 = vector.extract_strided_slice %44 {offsets = [0, 1, 128], sizes = [8, 8, 128], strides = [1, 1, 1]} : vector<8x16x256xf32> to vector<8x8x128xf32>
    %50 = arith.addf %48, %49 : vector<8x8x128xf32>
    %cst_64 = arith.constant dense<0.000000e+00> : vector<8x8xf32>
    %51 = vector.multi_reduction <add>, %50, %cst_64 [2] : vector<8x8x128xf32> to vector<8x8xf32>
    %52 = vector.shape_cast %51 : vector<8x8xf32> to vector<8x8x1xf32>
    %53 = arith.mulf %50, %50 : vector<8x8x128xf32>
    %cst_65 = arith.constant dense<0.000000e+00> : vector<8x8xf32>
    %54 = vector.multi_reduction <add>, %53, %cst_65 [2] : vector<8x8x128xf32> to vector<8x8xf32>
    %55 = vector.shape_cast %54 : vector<8x8xf32> to vector<8x8x1xf32>
    %cst_66 = arith.constant 7.812500e-03 : f32
    %56 = vector.broadcast %cst_66 : f32 to vector<8x8x1xf32>
    %57 = arith.mulf %52, %56 : vector<8x8x1xf32>
    %cst_67 = arith.constant 7.812500e-03 : f32
    %58 = vector.broadcast %cst_67 : f32 to vector<8x8x1xf32>
    %59 = arith.mulf %55, %58 : vector<8x8x1xf32>
    %60 = arith.mulf %57, %57 : vector<8x8x1xf32>
    %61 = arith.subf %59, %60 : vector<8x8x1xf32>
    %cst_68 = arith.constant 0.000000e+00 : f32
    %62 = vector.broadcast %cst_68 : f32 to vector<8x8x1xf32>
    %63 = arith.maximumf %61, %62 : vector<8x8x1xf32>
    %64 = vector.broadcast %57 : vector<8x8x1xf32> to vector<8x8x128xf32>
    %65 = arith.subf %50, %64 : vector<8x8x128xf32>
    %cst_69 = arith.constant 9.99999974E-6 : f32
    %66 = vector.broadcast %cst_69 : f32 to vector<8x8x1xf32>
    %67 = arith.addf %63, %66 : vector<8x8x1xf32>
    %68 = math.rsqrt %67 : vector<8x8x1xf32>
    %69 = vector.broadcast %68 : vector<8x8x1xf32> to vector<8x8x128xf32>
    %70 = arith.mulf %65, %69 : vector<8x8x128xf32>
    %c0_70 = arith.constant 0 : index
    %c0_71 = arith.constant 0 : index
    %71 = vector.load %arg5[%c0_70, %c0_71] : memref<1x128xf32, #tpu.memory_space<vmem>>, vector<1x128xf32>
    %72 = vector.shape_cast %71 : vector<1x128xf32> to vector<1x1x128xf32>
    %73 = vector.broadcast %72 : vector<1x1x128xf32> to vector<8x8x128xf32>
    %74 = arith.mulf %70, %73 : vector<8x8x128xf32>
    %c0_72 = arith.constant 0 : index
    %c0_73 = arith.constant 0 : index
    %75 = vector.load %arg6[%c0_72, %c0_73] : memref<1x128xf32, #tpu.memory_space<vmem>>, vector<1x128xf32>
    %76 = vector.shape_cast %75 : vector<1x128xf32> to vector<1x1x128xf32>
    %77 = vector.broadcast %76 : vector<1x1x128xf32> to vector<8x8x128xf32>
    %78 = arith.addf %74, %77 : vector<8x8x128xf32>
    %79 = arith.truncf %78 : vector<8x8x128xf32> to vector<8x8x128xbf16>
    %c0_74 = arith.constant 0 : index
    %c0_75 = arith.constant 0 : index
    %c0_76 = arith.constant 0 : index
    %c0_77 = arith.constant 0 : index
    %c0_78 = arith.constant 0 : index
    %80 = vector.load %arg7[%c0_74, %c0_75, %c0_76, %c0_77, %c0_78] : memref<1x1x8x8x128xbf16, #tpu.memory_space<vmem>>, vector<1x1x8x8x128xbf16>
    %81 = vector.shape_cast %80 : vector<1x1x8x8x128xbf16> to vector<8x8x128xbf16>
    %82 = vector.shape_cast %79 : vector<8x8x128xbf16> to vector<1x1x8x8x128xbf16>
    tpu.vector_store %arg7[%c0_74, %c0_75, %c0_76, %c0_77, %c0_78], %82 {strides = array<i32>} : memref<1x1x8x8x128xbf16, #tpu.memory_space<vmem>>, vector<1x1x8x8x128xbf16>,
    return
  }
  func.func @transform_0(%arg0: i32, %arg1: i32) -> (i32, i32, i32, i32, i32, i32, i32) {
    %c0_i32 = arith.constant 0 : i32
    %c0_i32_0 = arith.constant 0 : i32
    %c0_i32_1 = arith.constant 0 : i32
    %c0_i32_2 = arith.constant 0 : i32
    %c0_i32_3 = arith.constant 0 : i32
    %c0_i32_4 = arith.constant 0 : i32
    return %arg0, %arg1, %c0_i32, %c0_i32_0, %c0_i32_1, %c0_i32_2, %c0_i32_3 : i32, i32, i32, i32, i32, i32, i32
  }
  func.func @transform_1(%arg0: i32, %arg1: i32) -> (i32, i32, i32) {
    %c0_i32 = arith.constant 0 : i32
    %c0_i32_0 = arith.constant 0 : i32
    %c0_i32_1 = arith.constant 0 : i32
    %c0_i32_2 = arith.constant 0 : i32
    return %c0_i32, %c0_i32_0, %c0_i32_1 : i32, i32, i32
  }
  func.func @transform_2(%arg0: i32, %arg1: i32) -> (i32, i32, i32) {
    %c0_i32 = arith.constant 0 : i32
    %c0_i32_0 = arith.constant 0 : i32
    %c0_i32_1 = arith.constant 0 : i32
    %c0_i32_2 = arith.constant 0 : i32
    return %c0_i32, %c0_i32_0, %c0_i32_1 : i32, i32, i32
  }
  func.func @transform_3(%arg0: i32, %arg1: i32) -> (i32, i32) {
    %c0_i32 = arith.constant 0 : i32
    %c0_i32_0 = arith.constant 0 : i32
    %c0_i32_1 = arith.constant 0 : i32
    return %c0_i32, %c0_i32_0 : i32, i32
  }
  func.func @transform_4(%arg0: i32, %arg1: i32) -> (i32, i32) {
    %c0_i32 = arith.constant 0 : i32
    %c0_i32_0 = arith.constant 0 : i32
    %c0_i32_1 = arith.constant 0 : i32
    return %c0_i32, %c0_i32_0 : i32, i32
  }
  func.func @transform_5(%arg0: i32, %arg1: i32) -> (i32, i32, i32, i32, i32) {
    %c0_i32 = arith.constant 0 : i32
    %c0_i32_0 = arith.constant 0 : i32
    %c0_i32_1 = arith.constant 0 : i32
    %c0_i32_2 = arith.constant 0 : i32
    return %arg0, %arg1, %c0_i32, %c0_i32_0, %c0_i32_1 : i32, i32, i32, i32, i32
  }
}

</mosaic_0001>

<llo_original>
// kernel: conv_downsampler.1
$region0: #{conv_downsampler.1}
  #allocation0 [shape = 'u32[]', space=smem, size = 0x4, offset = 0x4, fixed_abs, tag = 'smem constant byte address 0x4 - core index']
  #allocation1 [shape = 'u32[144,128]{1,0:T(1,128)}', space=vmem, size = 0x12000, scoped, tag = 'internal scratch']
  %s0 = inlined_call_operand.vmem [shape: bf16[2,1,2,2,9,16,128], index: 0, kind: input, shape index: {}]
  %s1 = inlined_call_operand.vmem [shape: bf16[3,128,256], index: 1, kind: input, shape index: {}]
  %s2 = inlined_call_operand.vmem [shape: bf16[3,128,128], index: 2, kind: input, shape index: {}]
  %s3 = inlined_call_operand.vmem [shape: f32[1,128], index: 3, kind: input, shape index: {}]
  %s4 = inlined_call_operand.vmem [shape: f32[1,128], index: 4, kind: input, shape index: {}]
  %s5 = inlined_call_operand.hbm [shape: bf16[2,1,8,8,128], index: 5, kind: output, shape index: {}]
  %s6 = sld [smem:[#allocation0]]
  $region53: #{conv_downsampler.1} parent=0
    _
  %s8 = ssub.s32 1, %s6
  %s9 = scalar_select 0, %s8, %s6
  $region1: #{conv_downsampler.1} parent=0
    #allocation2 [shape = 'u8[32768]{0}', space=vmem, size = 0x8000, scoped, tag = 'output window, operand 0']
    #allocation3 [shape = 's32[2]{0}', space=sflag, size = 0x8, scoped, tag = 'scoped memory for conv_downsampler.1']
    %10 = vsyncpa [#allocation3], 0
    %s11 = scalar_lea.sflag [#allocation3], 1
    %12 = vsyncpa %s11, 0
    loop: start=0, step=1, limit=4
    $region2: #{conv_downsampler.1} parent=1 // loop_pre_header
      _
    $region3: #{conv_downsampler.1} parent=1 // loop_header
      %s14 = sphi 0, %s18
      %p15 = scmp.ge.s32.totalorder %s14, 4
      %s21 = sphi 0, %s33
      %s22 = sphi 0, %s29
      %s23 = sphi 0, %s21
      %s24 = sphi 0, %s22
      %s25 = sphi 0, %s23
      %s26 = sphi 0, %s24
      %s38 = sphi 0, %s40
      %s41 = sphi 0, %s38
      %s42 = sphi 0, %s41
      %s58 = sphi 0, %s42
      %s62 = sphi 0, %s62
      %s64 = sphi 0, %s62
      %s65 = sphi 0, %s64
      %s79 = sphi 0, %s65
      %s83 = sphi 0, %s83
      %s85 = sphi 0, %s83
      %s86 = sphi 0, %s85
      %s100 = sphi 0, %s86
      %s104 = sphi 0, %s104
      %s106 = sphi 0, %s104
      %s107 = sphi 0, %s106
      %s121 = sphi 0, %s107
      %s125 = sphi 0, %s125
      %s127 = sphi 0, %s125
      %s128 = sphi 0, %s127
      %s142 = sphi 0, %s128
      %s150 = sphi 0, %s152
      %s153 = sphi 0, %s150
      %s154 = sphi 0, %s153
      %s170 = sphi 0, %s154
    $region4: #{conv_downsampler.1} parent=1 // loop_header_branch
      %17 = sbr.rel (%p15) target = $region8
    $region5: #{conv_downsampler.1} parent=1 // loop_body
      %s19 = ssub.s32 %s14, 1
      %s20 = ssub.s32 %s14, 2
      %s27 = sadd.s32 1, %s22
      %p28 = scmp.ge.s32.totalorder %s27, 1
      %s29 = scalar_select %p28, 0, %s27
      %s30 = sadd.s32 1, %s21
      %s31 = scalar_select %p28, %s30, %s21
      %p32 = scmp.ge.s32.totalorder %s31, 2
      %s33 = scalar_select %p32, 0, %s31
      %s34 = ssub.s32 %s21, %s33
      %s35 = ssub.s32 %s22, %s29
      %s36 = sor.u32 %s34, %s35
      %p37 = scmp.eq.s32.totalorder %s36, 0
      %s39 = sadd.s32 %s38, 1
      %s40 = scalar_select %p37, %s38, %s39
      %p43 = pneg %p37
      %p44 = scmp.eq.s32.totalorder %s14, 1
      %p45 = por %p43, %p44
      %p46 = scmp.ne.s32.totalorder %s38, %s41
      %p47 = scmp.eq.s32.totalorder %s14, 0
      %p48 = por %p46, %p47
      %p49 = scmp.ne.s32.totalorder %s38, %s41
      %p50 = scmp.eq.s32.totalorder %s19, 1
      %p51 = por %p49, %p50
      %p52 = scmp.ne.s32.totalorder %s41, %s42
      %p53 = scmp.eq.s32.totalorder %s19, 0
      %p54 = por %p52, %p53
      %p55 = scmp.ne.s32.totalorder %s41, %s42
      %p56 = scmp.eq.s32.totalorder %s20, 1
      %p57 = por %p55, %p56
      %p59 = scmp.ne.s32.totalorder %s42, %s58
      %p60 = scmp.eq.s32.totalorder %s20, 0
      %p61 = por %p59, %p60
      %s63 = sadd.s32 %s62, 1
      %p66 = scmp.eq.s32.totalorder %s14, 1
      %p67 = scmp.ne.s32.totalorder %s62, %s64
      %p68 = scmp.eq.s32.totalorder %s14, 0
      %p69 = por %p67, %p68
      %p70 = scmp.ne.s32.totalorder %s62, %s64
      %p71 = scmp.eq.s32.totalorder %s19, 1
      %p72 = por %p70, %p71
      %p73 = scmp.ne.s32.totalorder %s64, %s65
      %p74 = scmp.eq.s32.totalorder %s19, 0
      %p75 = por %p73, %p74
      %p76 = scmp.ne.s32.totalorder %s64, %s65
      %p77 = scmp.eq.s32.totalorder %s20, 1
      %p78 = por %p76, %p77
      %p80 = scmp.ne.s32.totalorder %s65, %s79
      %p81 = scmp.eq.s32.totalorder %s20, 0
      %p82 = por %p80, %p81
      %s84 = sadd.s32 %s83, 1
      %p87 = scmp.eq.s32.totalorder %s14, 1
      %p88 = scmp.ne.s32.totalorder %s83, %s85
      %p89 = scmp.eq.s32.totalorder %s14, 0
      %p90 = por %p88, %p89
      %p91 = scmp.ne.s32.totalorder %s83, %s85
      %p92 = scmp.eq.s32.totalorder %s19, 1
      %p93 = por %p91, %p92
      %p94 = scmp.ne.s32.totalorder %s85, %s86
      %p95 = scmp.eq.s32.totalorder %s19, 0
      %p96 = por %p94, %p95
      %p97 = scmp.ne.s32.totalorder %s85, %s86
      %p98 = scmp.eq.s32.totalorder %s20, 1
      %p99 = por %p97, %p98
      %p101 = scmp.ne.s32.totalorder %s86, %s100
      %p102 = scmp.eq.s32.totalorder %s20, 0
      %p103 = por %p101, %p102
      %s105 = sadd.s32 %s104, 1
      %p108 = scmp.eq.s32.totalorder %s14, 1
      %p109 = scmp.ne.s32.totalorder %s104, %s106
      %p110 = scmp.eq.s32.totalorder %s14, 0
      %p111 = por %p109, %p110
      %p112 = scmp.ne.s32.totalorder %s104, %s106
      %p113 = scmp.eq.s32.totalorder %s19, 1
      %p114 = por %p112, %p113
      %p115 = scmp.ne.s32.totalorder %s106, %s107
      %p116 = scmp.eq.s32.totalorder %s19, 0
      %p117 = por %p115, %p116
      %p118 = scmp.ne.s32.totalorder %s106, %s107
      %p119 = scmp.eq.s32.totalorder %s20, 1
      %p120 = por %p118, %p119
      %p122 = scmp.ne.s32.totalorder %s107, %s121
      %p123 = scmp.eq.s32.totalorder %s20, 0
      %p124 = por %p122, %p123
      %s126 = sadd.s32 %s125, 1
      %p129 = scmp.eq.s32.totalorder %s14, 1
      %p130 = scmp.ne.s32.totalorder %s125, %s127
      %p131 = scmp.eq.s32.totalorder %s14, 0
      %p132 = por %p130, %p131
      %p133 = scmp.ne.s32.totalorder %s125, %s127
      %p134 = scmp.eq.s32.totalorder %s19, 1
      %p135 = por %p133, %p134
      %p136 = scmp.ne.s32.totalorder %s127, %s128
      %p137 = scmp.eq.s32.totalorder %s19, 0
      %p138 = por %p136, %p137
      %p139 = scmp.ne.s32.totalorder %s127, %s128
      %p140 = scmp.eq.s32.totalorder %s20, 1
      %p141 = por %p139, %p140
      %p143 = scmp.ne.s32.totalorder %s128, %s142
      %p144 = scmp.eq.s32.totalorder %s20, 0
      %p145 = por %p143, %p144
      %s146 = ssub.s32 %s21, %s33
      %s147 = ssub.s32 %s22, %s29
      %s148 = sor.u32 %s146, %s147
      %p149 = scmp.eq.s32.totalorder %s148, 0
      %s151 = sadd.s32 %s150, 1
      %s152 = scalar_select %p149, %s150, %s151
      %p155 = pneg %p149
      %p156 = scmp.eq.s32.totalorder %s14, 1
      %p157 = por %p155, %p156
      %p158 = scmp.ne.s32.totalorder %s150, %s153
      %p159 = scmp.eq.s32.totalorder %s14, 0
      %p160 = por %p158, %p159
      %p161 = scmp.ne.s32.totalorder %s150, %s153
      %p162 = scmp.eq.s32.totalorder %s19, 1
      %p163 = por %p161, %p162
      %p164 = scmp.ne.s32.totalorder %s153, %s154
      %p165 = scmp.eq.s32.totalorder %s19, 0
      %p166 = por %p164, %p165
      %p167 = scmp.ne.s32.totalorder %s153, %s154
      %p168 = scmp.eq.s32.totalorder %s20, 1
      %p169 = por %p167, %p168
      %p171 = scmp.ne.s32.totalorder %s154, %s170
      %p172 = scmp.eq.s32.totalorder %s20, 0
      %p173 = por %p171, %p172
      %p174 = scmp.le.s32.totalorder 1, %s14
      %p175 = scmp.lt.s32.totalorder %s14, 3
      %p176 = pnand %p174, %p175
      %p177 = pneg %p176
      // Predicated region
      $region9: #{conv_downsampler.1} parent=5 // pred_check
        _
      $region10: #{conv_downsampler.1} parent=5 // pred_check_branch
        %179 = sbr.rel (%p176) target = $region12
      $region11: #{conv_downsampler.1} parent=5 // pred_region
        %s180 = ssub.s32 %s14, 1
        // Predicated region
        $region13: #{conv_downsampler.1} parent=11 // pred_check
          %p181 = pneg %p75
        $region14: #{conv_downsampler.1} parent=11 // pred_check_branch
          %183 = sbr.rel (%p181) target = $region16
        $region15: #{conv_downsampler.1} parent=11 // pred_region
          _
        $region16: #{conv_downsampler.1} parent=11 // pred_fallthru
          _
        // Predicated region
        $region17: #{conv_downsampler.1} parent=11 // pred_check
          %p184 = pneg %p96
        $region18: #{conv_downsampler.1} parent=11 // pred_check_branch
          %186 = sbr.rel (%p184) target = $region20
        $region19: #{conv_downsampler.1} parent=11 // pred_region
          _
        $region20: #{conv_downsampler.1} parent=11 // pred_fallthru
          _
        // Predicated region
        $region21: #{conv_downsampler.1} parent=11 // pred_check
          %p187 = pneg %p117
        $region22: #{conv_downsampler.1} parent=11 // pred_check_branch
          %189 = sbr.rel (%p187) target = $region24
        $region23: #{conv_downsampler.1} parent=11 // pred_region
          _
        $region24: #{conv_downsampler.1} parent=11 // pred_fallthru
          _
        // Predicated region
        $region25: #{conv_downsampler.1} parent=11 // pred_check
          %p190 = pneg %p138
        $region26: #{conv_downsampler.1} parent=11 // pred_check_branch
          %192 = sbr.rel (%p190) target = $region28
        $region27: #{conv_downsampler.1} parent=11 // pred_region
          _
        $region28: #{conv_downsampler.1} parent=11 // pred_fallthru
          _
      $region12: #{conv_downsampler.1} parent=5 // pred_fallthru
        _
      %p193 = scmp.lt.s32.totalorder %s14, 2
      // Predicated region
      $region29: #{conv_downsampler.1} parent=5 // pred_check
        %p194 = pneg %p193
      $region30: #{conv_downsampler.1} parent=5 // pred_check_branch
        %196 = sbr.rel (%p194) target = $region32
      $region31: #{conv_downsampler.1} parent=5 // pred_region
        // Predicated region
        $region33: #{conv_downsampler.1} parent=31 // pred_check
          %p197 = pneg %p48
        $region34: #{conv_downsampler.1} parent=31 // pred_check_branch
          %199 = sbr.rel (%p197) target = $region36
        $region35: #{conv_downsampler.1} parent=31 // pred_region
          %p200 = scmp.lt.s32.totalorder %s21, 1
          %s201 = scalar_select %p200, %s21, 1
          %p202 = scmp.lt.s32.totalorder %s22, 0
          %s203 = scalar_select %p202, %s22, 0
          %s204 = smul.addr %s203, 72
          %s205 = smul.addr %s201, 72
          %s206 = sadd.s32 %s204, %s205
          %s207 = smul.addr %s206, 4
          %s208 = scalar_lea.vmem %s0, %s207
        $region36: #{conv_downsampler.1} parent=31 // pred_fallthru
          _
      $region32: #{conv_downsampler.1} parent=5 // pred_fallthru
        _
      %p209 = scmp.le.s32.totalorder 1, %s14
      %p210 = scmp.lt.s32.totalorder %s14, 3
      %p211 = pnand %p209, %p210
      %p212 = pneg %p211
      // Predicated region
      $region37: #{conv_downsampler.1} parent=5 // pred_check
        _
      $region38: #{conv_downsampler.1} parent=5 // pred_check_branch
        %214 = sbr.rel (%p211) target = $region40
      $region39: #{conv_downsampler.1} parent=5 // pred_region
        %s215 = ssub.s32 %s14, 1
        %p216 = scmp.lt.s32.totalorder %s23, 1
        %s217 = scalar_select %p216, %s23, 1
        %p218 = scmp.lt.s32.totalorder %s24, 0
        %s219 = scalar_select %p218, %s24, 0
        %s220 = smul.addr %s219, 72
        %s221 = smul.addr %s217, 72
        %s222 = sadd.s32 %s220, %s221
        %s223 = smul.addr %s222, 4
        %s224 = scalar_lea.vmem %s0, %s223
        %p225 = pneg %p54
        %p226 = pneg %p51
        %p227 = pneg %p75
        %p228 = pneg %p72
        %p229 = pneg %p96
        %p230 = pneg %p93
        %p231 = pneg %p117
        %p232 = pneg %p114
        %p233 = pneg %p138
        %p234 = pneg %p135
        %p235 = pneg %p166
        %p236 = pneg %p163
        %s237 = sand.u32 %s153, 1
        %s238 = scalar_lea.sflag [#allocation3], %s237
        %s239 = sand.u32 %s153, 1
        %s240 = smul.addr %s239, 32
        %s241 = scalar_lea.vmem [#allocation2], %s240
        %p242 = scmp.lt.s32.totalorder %s23, 1
        %s243 = scalar_select %p242, %s23, 1
        %p244 = scmp.lt.s32.totalorder %s24, 0
        %s245 = scalar_select %p244, %s24, 0
        %s246 = smul.addr %s245, 72
        %s247 = smul.addr %s243, 72
        %s248 = sadd.s32 %s246, %s247
        %s249 = smul.addr %s248, 4
        %s250 = scalar_lea.vmem %s0, %s249
        %v252 = vld [vmem:[%s250] sm:$0xf]
        %v253 = vld [vmem:[%s250 + $0x4] sm:$0xf]
        %v254 = vld [vmem:[%s250 + $0x8] sm:$0xf]
        %v255 = vld [vmem:[%s250 + $0xc] sm:$0xf]
        %v256 = vld [vmem:[%s250 + $0x10] sm:$0xf]
        %v257 = vld [vmem:[%s250 + $0x14] sm:$0xf]
        %v258 = vld [vmem:[%s250 + $0x18] sm:$0xf]
        %v259 = vld [vmem:[%s250 + $0x1c] sm:$0xf]
        %v260 = vld [vmem:[%s250 + $0x20] sm:$0xf]
        %v261 = vld [vmem:[%s250 + $0x24] sm:$0xf]
        %v262 = vld [vmem:[%s250 + $0x28] sm:$0xf]
        %v263 = vld [vmem:[%s250 + $0x2c] sm:$0xf]
        %v264 = vld [vmem:[%s250 + $0x30] sm:$0xf]
        %v265 = vld [vmem:[%s250 + $0x34] sm:$0xf]
        %v266 = vld [vmem:[%s250 + $0x38] sm:$0xf]
        %v267 = vld [vmem:[%s250 + $0x3c] sm:$0xf]
        %s268 = scalar_lea.vmem %s250, 72
        %v269 = vld [vmem:[%s268] sm:$0xf]
        %v270 = vld [vmem:[%s268 + $0x4] sm:$0xf]
        %v271 = vld [vmem:[%s268 + $0x8] sm:$0xf]
        %v272 = vld [vmem:[%s268 + $0xc] sm:$0xf]
        %v273 = vld [vmem:[%s268 + $0x10] sm:$0xf]
        %v274 = vld [vmem:[%s268 + $0x14] sm:$0xf]
        %v275 = vld [vmem:[%s268 + $0x18] sm:$0xf]
        %v276 = vld [vmem:[%s268 + $0x1c] sm:$0xf]
        %v277 = vld [vmem:[%s268 + $0x20] sm:$0xf]
        %v278 = vld [vmem:[%s268 + $0x24] sm:$0xf]
        %v279 = vld [vmem:[%s268 + $0x28] sm:$0xf]
        %v280 = vld [vmem:[%s268 + $0x2c] sm:$0xf]
        %v281 = vld [vmem:[%s268 + $0x30] sm:$0xf]
        %v282 = vld [vmem:[%s268 + $0x34] sm:$0xf]
        %v283 = vld [vmem:[%s268 + $0x38] sm:$0xf]
        %v284 = vld [vmem:[%s268 + $0x3c] sm:$0xf]
        %v285 = vld [vmem:[%s1] sm:$0xff]
        %v286 = vld [vmem:[%s1 + $0x8] sm:$0xff]
        %v287 = vld [vmem:[%s1 + $0x10] sm:$0xff]
        %v288 = vld [vmem:[%s1 + $0x18] sm:$0xff]
        %v289 = vld [vmem:[%s1 + $0x20] sm:$0xff]
        %v290 = vld [vmem:[%s1 + $0x28] sm:$0xff]
        %v291 = vld [vmem:[%s1 + $0x30] sm:$0xff]
        %v292 = vld [vmem:[%s1 + $0x38] sm:$0xff]
        %v293 = vld [vmem:[%s1 + $0x40] sm:$0xff]
        %v294 = vld [vmem:[%s1 + $0x48] sm:$0xff]
        %v295 = vld [vmem:[%s1 + $0x50] sm:$0xff]
        %v296 = vld [vmem:[%s1 + $0x58] sm:$0xff]
        %v297 = vld [vmem:[%s1 + $0x60] sm:$0xff]
        %v298 = vld [vmem:[%s1 + $0x68] sm:$0xff]
        %v299 = vld [vmem:[%s1 + $0x70] sm:$0xff]
        %v300 = vld [vmem:[%s1 + $0x78] sm:$0xff]
        %v301 = vld [vmem:[%s2] sm:$0xf]
        %v302 = vld [vmem:[%s2 + $0x4] sm:$0xf]
        %v303 = vld [vmem:[%s2 + $0x8] sm:$0xf]
        %v304 = vld [vmem:[%s2 + $0xc] sm:$0xf]
        %v305 = vld [vmem:[%s2 + $0x10] sm:$0xf]
        %v306 = vld [vmem:[%s2 + $0x14] sm:$0xf]
        %v307 = vld [vmem:[%s2 + $0x18] sm:$0xf]
        %v308 = vld [vmem:[%s2 + $0x1c] sm:$0xf]
        %v309 = vld [vmem:[%s2 + $0x20] sm:$0xf]
        %v310 = vld [vmem:[%s2 + $0x24] sm:$0xf]
        %v311 = vld [vmem:[%s2 + $0x28] sm:$0xf]
        %v312 = vld [vmem:[%s2 + $0x2c] sm:$0xf]
        %v313 = vld [vmem:[%s2 + $0x30] sm:$0xf]
        %v314 = vld [vmem:[%s2 + $0x34] sm:$0xf]
        %v315 = vld [vmem:[%s2 + $0x38] sm:$0xf]
        %v316 = vld [vmem:[%s2 + $0x3c] sm:$0xf]
        %s317 = scalar_lea.vmem %s250, 144
        %v318 = vld [vmem:[%s317] sm:$0xf]
        %v319 = vld [vmem:[%s317 + $0x4] sm:$0xf]
        %v320 = vld [vmem:[%s317 + $0x8] sm:$0xf]
        %v321 = vld [vmem:[%s317 + $0xc] sm:$0xf]
        %v322 = vld [vmem:[%s317 + $0x10] sm:$0xf]
        %v323 = vld [vmem:[%s317 + $0x14] sm:$0xf]
        %v324 = vld [vmem:[%s317 + $0x18] sm:$0xf]
        %v325 = vld [vmem:[%s317 + $0x1c] sm:$0xf]
        %v326 = vld [vmem:[%s317 + $0x20] sm:$0xf]
        %v327 = vld [vmem:[%s317 + $0x24] sm:$0xf]
        %v328 = vld [vmem:[%s317 + $0x28] sm:$0xf]
        %v329 = vld [vmem:[%s317 + $0x2c] sm:$0xf]
        %v330 = vld [vmem:[%s317 + $0x30] sm:$0xf]
        %v331 = vld [vmem:[%s317 + $0x34] sm:$0xf]
        %v332 = vld [vmem:[%s317 + $0x38] sm:$0xf]
        %v333 = vld [vmem:[%s317 + $0x3c] sm:$0xf]
        %s334 = scalar_lea.vmem %s250, 216
        %v335 = vld [vmem:[%s334] sm:$0xf]
        %v336 = vld [vmem:[%s334 + $0x4] sm:$0xf]
        %v337 = vld [vmem:[%s334 + $0x8] sm:$0xf]
        %v338 = vld [vmem:[%s334 + $0xc] sm:$0xf]
        %v339 = vld [vmem:[%s334 + $0x10] sm:$0xf]
        %v340 = vld [vmem:[%s334 + $0x14] sm:$0xf]
        %v341 = vld [vmem:[%s334 + $0x18] sm:$0xf]
        %v342 = vld [vmem:[%s334 + $0x1c] sm:$0xf]
        %v343 = vld [vmem:[%s334 + $0x20] sm:$0xf]
        %v344 = vld [vmem:[%s334 + $0x24] sm:$0xf]
        %v345 = vld [vmem:[%s334 + $0x28] sm:$0xf]
        %v346 = vld [vmem:[%s334 + $0x2c] sm:$0xf]
        %v347 = vld [vmem:[%s334 + $0x30] sm:$0xf]
        %v348 = vld [vmem:[%s334 + $0x34] sm:$0xf]
        %v349 = vld [vmem:[%s334 + $0x38] sm:$0xf]
        %v350 = vld [vmem:[%s334 + $0x3c] sm:$0xf]
        %s351 = scalar_lea.vmem %s1, 128
        %v352 = vld [vmem:[%s351] sm:$0xff]
        %v353 = vld [vmem:[%s351 + $0x8] sm:$0xff]
        %v354 = vld [vmem:[%s351 + $0x10] sm:$0xff]
        %v355 = vld [vmem:[%s351 + $0x18] sm:$0xff]
        %v356 = vld [vmem:[%s351 + $0x20] sm:$0xff]
        %v357 = vld [vmem:[%s351 + $0x28] sm:$0xff]
        %v358 = vld [vmem:[%s351 + $0x30] sm:$0xff]
        %v359 = vld [vmem:[%s351 + $0x38] sm:$0xff]
        %v360 = vld [vmem:[%s351 + $0x40] sm:$0xff]
        %v361 = vld [vmem:[%s351 + $0x48] sm:$0xff]
        %v362 = vld [vmem:[%s351 + $0x50] sm:$0xff]
        %v363 = vld [vmem:[%s351 + $0x58] sm:$0xff]
        %v364 = vld [vmem:[%s351 + $0x60] sm:$0xff]
        %v365 = vld [vmem:[%s351 + $0x68] sm:$0xff]
        %v366 = vld [vmem:[%s351 + $0x70] sm:$0xff]
        %v367 = vld [vmem:[%s351 + $0x78] sm:$0xff]
        %v384 = vunpack.c.l.b16 %v318
        %v385 = vunpack.c.l.b16 %v319
        %v386 = vunpack.c.l.b16 %v320
        %v387 = vunpack.c.l.b16 %v321
        %v388 = vunpack.c.l.b16 %v322
        %v389 = vunpack.c.l.b16 %v323
        %v390 = vunpack.c.l.b16 %v324
        %v391 = vunpack.c.l.b16 %v325
        %v392 = vunpack.c.l.b16 %v326
        %v393 = vunpack.c.l.b16 %v327
        %v394 = vunpack.c.l.b16 %v328
        %v395 = vunpack.c.l.b16 %v329
        %v396 = vunpack.c.l.b16 %v330
        %v397 = vunpack.c.l.b16 %v331
        %v398 = vunpack.c.l.b16 %v332
        %v399 = vunpack.c.l.b16 %v333
        %v400 = vpack.c.b16 %v385, %v384
        %v401 = vpack.c.b16 %v387, %v386
        %v402 = vpack.c.b16 %v389, %v388
        %v403 = vpack.c.b16 %v391, %v390
        %v404 = vpack.c.b16 %v393, %v392
        %v405 = vpack.c.b16 %v395, %v394
        %v406 = vpack.c.b16 %v397, %v396
        %v407 = vpack.c.b16 %v399, %v398
        %v432 = vunpack.c.l.b16 %v352
        %v433 = vunpack.c.h.b16 %v352
        %v434 = vunpack.c.l.b16 %v353
        %v435 = vunpack.c.h.b16 %v353
        %v436 = vunpack.c.l.b16 %v354
        %v437 = vunpack.c.h.b16 %v354
        %v438 = vunpack.c.l.b16 %v355
        %v439 = vunpack.c.h.b16 %v355
        %v440 = vunpack.c.l.b16 %v356
        %v441 = vunpack.c.h.b16 %v356
        %v442 = vunpack.c.l.b16 %v357
        %v443 = vunpack.c.h.b16 %v357
        %v444 = vunpack.c.l.b16 %v358
        %v445 = vunpack.c.h.b16 %v358
        %v446 = vunpack.c.l.b16 %v359
        %v447 = vunpack.c.h.b16 %v359
        %v448 = vunpack.c.l.b16 %v360
        %v449 = vunpack.c.h.b16 %v360
        %v450 = vunpack.c.l.b16 %v361
        %v451 = vunpack.c.h.b16 %v361
        %v452 = vunpack.c.l.b16 %v362
        %v453 = vunpack.c.h.b16 %v362
        %v454 = vunpack.c.l.b16 %v363
        %v455 = vunpack.c.h.b16 %v363
        %v456 = vunpack.c.l.b16 %v364
        %v457 = vunpack.c.h.b16 %v364
        %v458 = vunpack.c.l.b16 %v365
        %v459 = vunpack.c.h.b16 %v365
        %v460 = vunpack.c.l.b16 %v366
        %v461 = vunpack.c.h.b16 %v366
        %v462 = vunpack.c.l.b16 %v367
        %v463 = vunpack.c.h.b16 %v367
        %v464 = vpack.c.b16 %v434, %v432
        %v465 = vpack.c.b16 %v435, %v433
        %v466 = vpack.c.b16 %v438, %v436
        %v467 = vpack.c.b16 %v439, %v437
        %v468 = vpack.c.b16 %v442, %v440
        %v469 = vpack.c.b16 %v443, %v441
        %v470 = vpack.c.b16 %v446, %v444
        %v471 = vpack.c.b16 %v447, %v445
        %v472 = vpack.c.b16 %v450, %v448
        %v473 = vpack.c.b16 %v451, %v449
        %v474 = vpack.c.b16 %v454, %v452
        %v475 = vpack.c.b16 %v455, %v453
        %v476 = vpack.c.b16 %v458, %v456
        %v477 = vpack.c.b16 %v459, %v457
        %v478 = vpack.c.b16 %v462, %v460
        %v479 = vpack.c.b16 %v463, %v461
        %496 = vmatprep.subr.bf16.mxu0 %v465
        %497 = vmatpush1.bf16.msra.mxu0 %v464
        %498 = vmatprep.subr.bf16.mxu0 %v467
        %499 = vmatpush1.bf16.msra.mxu0 %v466
        %500 = vmatprep.subr.bf16.mxu0 %v469
        %501 = vmatpush1.bf16.msra.mxu0 %v468
        %502 = vmatprep.subr.bf16.mxu0 %v471
        %503 = vmatpush1.bf16.msra.mxu0 %v470
        %504 = vmatprep.subr.bf16.mxu0 %v473
        %505 = vmatpush1.bf16.msra.mxu0 %v472
        %506 = vmatprep.subr.bf16.mxu0 %v475
        %507 = vmatpush1.bf16.msra.mxu0 %v474
        %508 = vmatprep.subr.bf16.mxu0 %v477
        %509 = vmatpush1.bf16.msra.mxu0 %v476
        %510 = vmatprep.subr.bf16.mxu0 %v479
        %511 = vmatpush1.bf16.msra.mxu0 %v478
        %512 = vmatprep.subr.bf16.mxu0 0
        %513 = vmatpush1.bf16.msra.mxu0 0
        %514 = vmatprep.subr.bf16.mxu0 0
        %515 = vmatpush1.bf16.msra.mxu0 0
        %516 = vmatprep.subr.bf16.mxu0 0
        %517 = vmatpush1.bf16.msra.mxu0 0
        %518 = vmatprep.subr.bf16.mxu0 0
        %519 = vmatpush1.bf16.msra.mxu0 0
        %520 = vmatprep.subr.bf16.mxu0 0
        %521 = vmatpush1.bf16.msra.mxu0 0
        %522 = vmatprep.subr.bf16.mxu0 0
        %523 = vmatpush1.bf16.msra.mxu0 0
        %524 = vmatprep.subr.bf16.mxu0 0
        %525 = vmatpush1.bf16.msra.mxu0 0
        %526 = vmatprep.subr.bf16.mxu0 0
        %527 = vmatpush1.bf16.msra.mxu0 0
        %528 = vmatprep.mubr.bf16.mxu0 0
        %529 = vmatmul.mubr.bf16.gmra.mrb[0].mxu0 %v400
        %v530 = vpop.f32.mrb[0].mxu0
        %v531 = vadd.f32 0.0, %v530
        %v532 = vpop.f32.mrb[0].mxu0
        %v533 = vadd.f32 0.0, %v532
        %v534 = vpop.f32.mrb[0].mxu0
        %v535 = vpop.f32.mrb[0].mxu0
        %v536 = vadd.f32 0.0, %v535
        %537 = vmatprep.mubr.bf16.mxu0 0
        %538 = vmatmul.mubr.bf16.gmra.mrb[0].mxu0 %v401
        %v539 = vpop.f32.mrb[0].mxu0
        %v540 = vadd.f32 0.0, %v539
        %v541 = vpop.f32.mrb[0].mxu0
        %v542 = vadd.f32 0.0, %v541
        %v543 = vpop.f32.mrb[0].mxu0
        %v544 = vpop.f32.mrb[0].mxu0
        %v545 = vadd.f32 0.0, %v544
        %546 = vmatprep.mubr.bf16.mxu0 0
        %547 = vmatmul.mubr.bf16.gmra.mrb[0].mxu0 %v402
        %v548 = vpop.f32.mrb[0].mxu0
        %v549 = vadd.f32 0.0, %v548
        %v550 = vpop.f32.mrb[0].mxu0
        %v551 = vadd.f32 0.0, %v550
        %v552 = vpop.f32.mrb[0].mxu0
        %v553 = vpop.f32.mrb[0].mxu0
        %v554 = vadd.f32 0.0, %v553
        %555 = vmatprep.mubr.bf16.mxu0 0
        %556 = vmatmul.mubr.bf16.gmra.mrb[0].mxu0 %v403
        %v557 = vpop.f32.mrb[0].mxu0
        %v558 = vadd.f32 0.0, %v557
        %v559 = vpop.f32.mrb[0].mxu0
        %v560 = vadd.f32 0.0, %v559
        %v561 = vpop.f32.mrb[0].mxu0
        %v562 = vpop.f32.mrb[0].mxu0
        %v563 = vadd.f32 0.0, %v562
        %564 = vmatprep.mubr.bf16.mxu0 0
        %565 = vmatmul.mubr.bf16.gmra.mrb[0].mxu0 %v404
        %v566 = vpop.f32.mrb[0].mxu0
        %v567 = vadd.f32 0.0, %v566
        %v568 = vpop.f32.mrb[0].mxu0
        %v569 = vadd.f32 0.0, %v568
        %v570 = vpop.f32.mrb[0].mxu0
        %v571 = vpop.f32.mrb[0].mxu0
        %v572 = vadd.f32 0.0, %v571
        %573 = vmatprep.mubr.bf16.mxu0 0
        %574 = vmatmul.mubr.bf16.gmra.mrb[0].mxu0 %v405
        %v575 = vpop.f32.mrb[0].mxu0
        %v576 = vadd.f32 0.0, %v575
        %v577 = vpop.f32.mrb[0].mxu0
        %v578 = vadd.f32 0.0, %v577
        %v579 = vpop.f32.mrb[0].mxu0
        %v580 = vpop.f32.mrb[0].mxu0
        %v581 = vadd.f32 0.0, %v580
        %582 = vmatprep.mubr.bf16.mxu0 0
        %583 = vmatmul.mubr.bf16.gmra.mrb[0].mxu0 %v406
        %v584 = vpop.f32.mrb[0].mxu0
        %v585 = vadd.f32 0.0, %v584
        %v586 = vpop.f32.mrb[0].mxu0
        %v587 = vadd.f32 0.0, %v586
        %v588 = vpop.f32.mrb[0].mxu0
        %v589 = vpop.f32.mrb[0].mxu0
        %v590 = vadd.f32 0.0, %v589
        %591 = vmatprep.mubr.bf16.mxu0 0
        %592 = vmatmul.mubr.bf16.gmra.mrb[0].mxu0 %v407
        %v593 = vpop.f32.mrb[0].mxu0
        %v594 = vadd.f32 0.0, %v593
        %v595 = vpop.f32.mrb[0].mxu0
        %v596 = vadd.f32 0.0, %v595
        %v597 = vpop.f32.mrb[0].mxu0
        %v598 = vpop.f32.mrb[0].mxu0
        %v599 = vadd.f32 0.0, %v598
        %600 = vdwg.mxu0
        %v617 = vunpack.c.l.b16 %v252
        %v618 = vunpack.c.l.b16 %v253
        %v619 = vunpack.c.l.b16 %v254
        %v620 = vunpack.c.l.b16 %v255
        %v621 = vunpack.c.l.b16 %v256
        %v622 = vunpack.c.l.b16 %v257
        %v623 = vunpack.c.l.b16 %v258
        %v624 = vunpack.c.l.b16 %v259
        %v625 = vunpack.c.l.b16 %v260
        %v626 = vunpack.c.l.b16 %v261
        %v627 = vunpack.c.l.b16 %v262
        %v628 = vunpack.c.l.b16 %v263
        %v629 = vunpack.c.l.b16 %v264
        %v630 = vunpack.c.l.b16 %v265
        %v631 = vunpack.c.l.b16 %v266
        %v632 = vunpack.c.l.b16 %v267
        %v633 = vpack.c.b16 %v618, %v617
        %v634 = vpack.c.b16 %v620, %v619
        %v635 = vpack.c.b16 %v622, %v621
        %v636 = vpack.c.b16 %v624, %v623
        %v637 = vpack.c.b16 %v626, %v625
        %v638 = vpack.c.b16 %v628, %v627
        %v639 = vpack.c.b16 %v630, %v629
        %v640 = vpack.c.b16 %v632, %v631
        %v665 = vunpack.c.l.b16 %v285
        %v666 = vunpack.c.h.b16 %v285
        %v667 = vunpack.c.l.b16 %v286
        %v668 = vunpack.c.h.b16 %v286
        %v669 = vunpack.c.l.b16 %v287
        %v670 = vunpack.c.h.b16 %v287
        %v671 = vunpack.c.l.b16 %v288
        %v672 = vunpack.c.h.b16 %v288
        %v673 = vunpack.c.l.b16 %v289
        %v674 = vunpack.c.h.b16 %v289
        %v675 = vunpack.c.l.b16 %v290
        %v676 = vunpack.c.h.b16 %v290
        %v677 = vunpack.c.l.b16 %v291
        %v678 = vunpack.c.h.b16 %v291
        %v679 = vunpack.c.l.b16 %v292
        %v680 = vunpack.c.h.b16 %v292
        %v681 = vunpack.c.l.b16 %v293
        %v682 = vunpack.c.h.b16 %v293
        %v683 = vunpack.c.l.b16 %v294
        %v684 = vunpack.c.h.b16 %v294
        %v685 = vunpack.c.l.b16 %v295
        %v686 = vunpack.c.h.b16 %v295
        %v687 = vunpack.c.l.b16 %v296
        %v688 = vunpack.c.h.b16 %v296
        %v689 = vunpack.c.l.b16 %v297
        %v690 = vunpack.c.h.b16 %v297
        %v691 = vunpack.c.l.b16 %v298
        %v692 = vunpack.c.h.b16 %v298
        %v693 = vunpack.c.l.b16 %v299
        %v694 = vunpack.c.h.b16 %v299
        %v695 = vunpack.c.l.b16 %v300
        %v696 = vunpack.c.h.b16 %v300
        %v697 = vpack.c.b16 %v667, %v665
        %v698 = vpack.c.b16 %v668, %v666
        %v699 = vpack.c.b16 %v671, %v669
        %v700 = vpack.c.b16 %v672, %v670
        %v701 = vpack.c.b16 %v675, %v673
        %v702 = vpack.c.b16 %v676, %v674
        %v703 = vpack.c.b16 %v679, %v677
        %v704 = vpack.c.b16 %v680, %v678
        %v705 = vpack.c.b16 %v683, %v681
        %v706 = vpack.c.b16 %v684, %v682
        %v707 = vpack.c.b16 %v687, %v685
        %v708 = vpack.c.b16 %v688, %v686
        %v709 = vpack.c.b16 %v691, %v689
        %v710 = vpack.c.b16 %v692, %v690
        %v711 = vpack.c.b16 %v695, %v693
        %v712 = vpack.c.b16 %v696, %v694
        %729 = vmatprep.subr.bf16.mxu0 %v698
        %730 = vmatpush1.bf16.msra.mxu0 %v697
        %731 = vmatprep.subr.bf16.mxu0 %v700
        %732 = vmatpush1.bf16.msra.mxu0 %v699
        %733 = vmatprep.subr.bf16.mxu0 %v702
        %734 = vmatpush1.bf16.msra.mxu0 %v701
        %735 = vmatprep.subr.bf16.mxu0 %v704
        %736 = vmatpush1.bf16.msra.mxu0 %v703
        %737 = vmatprep.subr.bf16.mxu0 %v706
        %738 = vmatpush1.bf16.msra.mxu0 %v705
        %739 = vmatprep.subr.bf16.mxu0 %v708
        %740 = vmatpush1.bf16.msra.mxu0 %v707
        %741 = vmatprep.subr.bf16.mxu0 %v710
        %742 = vmatpush1.bf16.msra.mxu0 %v709
        %743 = vmatprep.subr.bf16.mxu0 %v712
        %744 = vmatpush1.bf16.msra.mxu0 %v711
        %745 = vmatprep.subr.bf16.mxu0 0
        %746 = vmatpush1.bf16.msra.mxu0 0
        %747 = vmatprep.subr.bf16.mxu0 0
        %748 = vmatpush1.bf16.msra.mxu0 0
        %749 = vmatprep.subr.bf16.mxu0 0
        %750 = vmatpush1.bf16.msra.mxu0 0
        %751 = vmatprep.subr.bf16.mxu0 0
        %752 = vmatpush1.bf16.msra.mxu0 0
        %753 = vmatprep.subr.bf16.mxu0 0
        %754 = vmatpush1.bf16.msra.mxu0 0
        %755 = vmatprep.subr.bf16.mxu0 0
        %756 = vmatpush1.bf16.msra.mxu0 0
        %757 = vmatprep.subr.bf16.mxu0 0
        %758 = vmatpush1.bf16.msra.mxu0 0
        %759 = vmatprep.subr.bf16.mxu0 0
        %760 = vmatpush1.bf16.msra.mxu0 0
        %761 = vmatprep.mubr.bf16.mxu0 0
        %762 = vmatmul.mubr.bf16.gmra.mrb[0].mxu0 %v633
        %v763 = vpop.f32.mrb[0].mxu0
        %v764 = vadd.f32 %v531, %v763
        %v765 = vpop.f32.mrb[0].mxu0
        %v766 = vadd.f32 %v533, %v765
        %v767 = vpop.f32.mrb[0].mxu0
        %v768 = vpop.f32.mrb[0].mxu0
        %v769 = vadd.f32 %v536, %v768
        %770 = vmatprep.mubr.bf16.mxu0 0
        %771 = vmatmul.mubr.bf16.gmra.mrb[0].mxu0 %v634
        %v772 = vpop.f32.mrb[0].mxu0
        %v773 = vadd.f32 %v540, %v772
        %v774 = vpop.f32.mrb[0].mxu0
        %v775 = vadd.f32 %v542, %v774
        %v776 = vpop.f32.mrb[0].mxu0
        %v777 = vpop.f32.mrb[0].mxu0
        %v778 = vadd.f32 %v545, %v777
        %779 = vmatprep.mubr.bf16.mxu0 0
        %780 = vmatmul.mubr.bf16.gmra.mrb[0].mxu0 %v635
        %v781 = vpop.f32.mrb[0].mxu0
        %v782 = vadd.f32 %v549, %v781
        %v783 = vpop.f32.mrb[0].mxu0
        %v784 = vadd.f32 %v551, %v783
        %v785 = vpop.f32.mrb[0].mxu0
        %v786 = vpop.f32.mrb[0].mxu0
        %v787 = vadd.f32 %v554, %v786
        %788 = vmatprep.mubr.bf16.mxu0 0
        %789 = vmatmul.mubr.bf16.gmra.mrb[0].mxu0 %v636
        %v790 = vpop.f32.mrb[0].mxu0
        %v791 = vadd.f32 %v558, %v790
        %v792 = vpop.f32.mrb[0].mxu0
        %v793 = vadd.f32 %v560, %v792
        %v794 = vpop.f32.mrb[0].mxu0
        %v795 = vpop.f32.mrb[0].mxu0
        %v796 = vadd.f32 %v563, %v795
        %797 = vmatprep.mubr.bf16.mxu0 0
        %798 = vmatmul.mubr.bf16.gmra.mrb[0].mxu0 %v637
        %v799 = vpop.f32.mrb[0].mxu0
        %v800 = vadd.f32 %v567, %v799
        %v801 = vpop.f32.mrb[0].mxu0
        %v802 = vadd.f32 %v569, %v801
        %v803 = vpop.f32.mrb[0].mxu0
        %v804 = vpop.f32.mrb[0].mxu0
        %v805 = vadd.f32 %v572, %v804
        %806 = vmatprep.mubr.bf16.mxu0 0
        %807 = vmatmul.mubr.bf16.gmra.mrb[0].mxu0 %v638
        %v808 = vpop.f32.mrb[0].mxu0
        %v809 = vadd.f32 %v576, %v808
        %v810 = vpop.f32.mrb[0].mxu0
        %v811 = vadd.f32 %v578, %v810
        %v812 = vpop.f32.mrb[0].mxu0
        %v813 = vpop.f32.mrb[0].mxu0
        %v814 = vadd.f32 %v581, %v813
        %815 = vmatprep.mubr.bf16.mxu0 0
        %816 = vmatmul.mubr.bf16.gmra.mrb[0].mxu0 %v639
        %v817 = vpop.f32.mrb[0].mxu0
        %v818 = vadd.f32 %v585, %v817
        %v819 = vpop.f32.mrb[0].mxu0
        %v820 = vadd.f32 %v587, %v819
        %v821 = vpop.f32.mrb[0].mxu0
        %v822 = vpop.f32.mrb[0].mxu0
        %v823 = vadd.f32 %v590, %v822
        %824 = vmatprep.mubr.bf16.mxu0 0
        %825 = vmatmul.mubr.bf16.gmra.mrb[0].mxu0 %v640
        %v826 = vpop.f32.mrb[0].mxu0
        %v827 = vadd.f32 %v594, %v826
        %v828 = vpop.f32.mrb[0].mxu0
        %v829 = vadd.f32 %v596, %v828
        %v830 = vpop.f32.mrb[0].mxu0
        %v831 = vpop.f32.mrb[0].mxu0
        %v832 = vadd.f32 %v599, %v831
        %833 = vdwg.mxu0
        %s834 = scalar_lea.vmem %s2, 64
        %v835 = vld [vmem:[%s834] sm:$0xf]
        %v836 = vld [vmem:[%s834 + $0x4] sm:$0xf]
        %v837 = vld [vmem:[%s834 + $0x8] sm:$0xf]
        %v838 = vld [vmem:[%s834 + $0xc] sm:$0xf]
        %v839 = vld [vmem:[%s834 + $0x10] sm:$0xf]
        %v840 = vld [vmem:[%s834 + $0x14] sm:$0xf]
        %v841 = vld [vmem:[%s834 + $0x18] sm:$0xf]
        %v842 = vld [vmem:[%s834 + $0x1c] sm:$0xf]
        %v843 = vld [vmem:[%s834 + $0x20] sm:$0xf]
        %v844 = vld [vmem:[%s834 + $0x24] sm:$0xf]
        %v845 = vld [vmem:[%s834 + $0x28] sm:$0xf]
        %v846 = vld [vmem:[%s834 + $0x2c] sm:$0xf]
        %v847 = vld [vmem:[%s834 + $0x30] sm:$0xf]
        %v848 = vld [vmem:[%s834 + $0x34] sm:$0xf]
        %v849 = vld [vmem:[%s834 + $0x38] sm:$0xf]
        %v850 = vld [vmem:[%s834 + $0x3c] sm:$0xf]
        %v867 = vunpack.c.l.b16 %v335
        %v868 = vunpack.c.l.b16 %v336
        %v869 = vunpack.c.l.b16 %v337
        %v870 = vunpack.c.l.b16 %v338
        %v871 = vunpack.c.l.b16 %v339
        %v872 = vunpack.c.l.b16 %v340
        %v873 = vunpack.c.l.b16 %v341
        %v874 = vunpack.c.l.b16 %v342
        %v875 = vunpack.c.l.b16 %v343
        %v876 = vunpack.c.l.b16 %v344
        %v877 = vunpack.c.l.b16 %v345
        %v878 = vunpack.c.l.b16 %v346
        %v879 = vunpack.c.l.b16 %v347
        %v880 = vunpack.c.l.b16 %v348
        %v881 = vunpack.c.l.b16 %v349
        %v882 = vunpack.c.l.b16 %v350
        %v883 = vpack.c.b16 %v868, %v867
        %v884 = vpack.c.b16 %v870, %v869
        %v885 = vpack.c.b16 %v872, %v871
        %v886 = vpack.c.b16 %v874, %v873
        %v887 = vpack.c.b16 %v876, %v875
        %v888 = vpack.c.b16 %v878, %v877
        %v889 = vpack.c.b16 %v880, %v879
        %v890 = vpack.c.b16 %v882, %v881
        %v915 = vunpack.c.l.b16 %v835
        %v916 = vunpack.c.l.b16 %v836
        %v917 = vunpack.c.l.b16 %v837
        %v918 = vunpack.c.l.b16 %v838
        %v919 = vunpack.c.l.b16 %v839
        %v920 = vunpack.c.l.b16 %v840
        %v921 = vunpack.c.l.b16 %v841
        %v922 = vunpack.c.l.b16 %v842
        %v923 = vunpack.c.l.b16 %v843
        %v924 = vunpack.c.l.b16 %v844
        %v925 = vunpack.c.l.b16 %v845
        %v926 = vunpack.c.l.b16 %v846
        %v927 = vunpack.c.l.b16 %v847
        %v928 = vunpack.c.l.b16 %v848
        %v929 = vunpack.c.l.b16 %v849
        %v930 = vunpack.c.l.b16 %v850
        %v931 = vpack.c.b16 %v916, %v915
        %v932 = vpack.c.b16 %v918, %v917
        %v933 = vpack.c.b16 %v920, %v919
        %v934 = vpack.c.b16 %v922, %v921
        %v935 = vpack.c.b16 %v924, %v923
        %v936 = vpack.c.b16 %v926, %v925
        %v937 = vpack.c.b16 %v928, %v927
        %v938 = vpack.c.b16 %v930, %v929
        %947 = vmatprep.subr.bf16.mxu0 0
        %948 = vmatpush1.bf16.msra.mxu0 %v931
        %949 = vmatprep.subr.bf16.mxu0 0
        %950 = vmatpush1.bf16.msra.mxu0 %v932
        %951 = vmatprep.subr.bf16.mxu0 0
        %952 = vmatpush1.bf16.msra.mxu0 %v933
        %953 = vmatprep.subr.bf16.mxu0 0
        %954 = vmatpush1.bf16.msra.mxu0 %v934
        %955 = vmatprep.subr.bf16.mxu0 0
        %956 = vmatpush1.bf16.msra.mxu0 %v935
        %957 = vmatprep.subr.bf16.mxu0 0
        %958 = vmatpush1.bf16.msra.mxu0 %v936
        %959 = vmatprep.subr.bf16.mxu0 0
        %960 = vmatpush1.bf16.msra.mxu0 %v937
        %961 = vmatprep.subr.bf16.mxu0 0
        %962 = vmatpush1.bf16.msra.mxu0 %v938
        %963 = vmatprep.subr.bf16.mxu0 0
        %964 = vmatpush1.bf16.msra.mxu0 0
        %965 = vmatprep.subr.bf16.mxu0 0
        %966 = vmatpush1.bf16.msra.mxu0 0
        %967 = vmatprep.subr.bf16.mxu0 0
        %968 = vmatpush1.bf16.msra.mxu0 0
        %969 = vmatprep.subr.bf16.mxu0 0
        %970 = vmatpush1.bf16.msra.mxu0 0
        %971 = vmatprep.subr.bf16.mxu0 0
        %972 = vmatpush1.bf16.msra.mxu0 0
        %973 = vmatprep.subr.bf16.mxu0 0
        %974 = vmatpush1.bf16.msra.mxu0 0
        %975 = vmatprep.subr.bf16.mxu0 0
        %976 = vmatpush1.bf16.msra.mxu0 0
        %977 = vmatprep.subr.bf16.mxu0 0
        %978 = vmatpush1.bf16.msra.mxu0 0
        %979 = vmatprep.mubr.bf16.mxu0 0
        %980 = vmatmul.mubr.bf16.gmra.mrb[0].mxu0 %v883
        %v981 = vpop.f32.mrb[0].mxu0
        %v982 = vadd.f32 0.0, %v981
        %v983 = vpop.f32.mrb[0].mxu0
        %v984 = vpop.f32.mrb[0].mxu0
        %v985 = vpop.f32.mrb[0].mxu0
        %986 = vmatprep.mubr.bf16.mxu0 0
        %987 = vmatmul.mubr.bf16.gmra.mrb[0].mxu0 %v884
        %v988 = vpop.f32.mrb[0].mxu0
        %v989 = vadd.f32 0.0, %v988
        %v990 = vpop.f32.mrb[0].mxu0
        %v991 = vpop.f32.mrb[0].mxu0
        %v992 = vpop.f32.mrb[0].mxu0
        %993 = vmatprep.mubr.bf16.mxu0 0
        %994 = vmatmul.mubr.bf16.gmra.mrb[0].mxu0 %v885
        %v995 = vpop.f32.mrb[0].mxu0
        %v996 = vadd.f32 0.0, %v995
        %v997 = vpop.f32.mrb[0].mxu0
        %v998 = vpop.f32.mrb[0].mxu0
        %v999 = vpop.f32.mrb[0].mxu0
        %1000 = vmatprep.mubr.bf16.mxu0 0
        %1001 = vmatmul.mubr.bf16.gmra.mrb[0].mxu0 %v886
        %v1002 = vpop.f32.mrb[0].mxu0
        %v1003 = vadd.f32 0.0, %v1002
        %v1004 = vpop.f32.mrb[0].mxu0
        %v1005 = vpop.f32.mrb[0].mxu0
        %v1006 = vpop.f32.mrb[0].mxu0
        %1007 = vmatprep.mubr.bf16.mxu0 0
        %1008 = vmatmul.mubr.bf16.gmra.mrb[0].mxu0 %v887
        %v1009 = vpop.f32.mrb[0].mxu0
        %v1010 = vadd.f32 0.0, %v1009
        %v1011 = vpop.f32.mrb[0].mxu0
        %v1012 = vpop.f32.mrb[0].mxu0
        %v1013 = vpop.f32.mrb[0].mxu0
        %1014 = vmatprep.mubr.bf16.mxu0 0
        %1015 = vmatmul.mubr.bf16.gmra.mrb[0].mxu0 %v888
        %v1016 = vpop.f32.mrb[0].mxu0
        %v1017 = vadd.f32 0.0, %v1016
        %v1018 = vpop.f32.mrb[0].mxu0
        %v1019 = vpop.f32.mrb[0].mxu0
        %v1020 = vpop.f32.mrb[0].mxu0
        %1021 = vmatprep.mubr.bf16.mxu0 0
        %1022 = vmatmul.mubr.bf16.gmra.mrb[0].mxu0 %v889
        %v1023 = vpop.f32.mrb[0].mxu0
        %v1024 = vadd.f32 0.0, %v1023
        %v1025 = vpop.f32.mrb[0].mxu0
        %v1026 = vpop.f32.mrb[0].mxu0
        %v1027 = vpop.f32.mrb[0].mxu0
        %1028 = vmatprep.mubr.bf16.mxu0 0
        %1029 = vmatmul.mubr.bf16.gmra.mrb[0].mxu0 %v890
        %v1030 = vpop.f32.mrb[0].mxu0
        %v1031 = vadd.f32 0.0, %v1030
        %v1032 = vpop.f32.mrb[0].mxu0
        %v1033 = vpop.f32.mrb[0].mxu0
        %v1034 = vpop.f32.mrb[0].mxu0
        %1035 = vdwg.mxu0
        %v1052 = vunpack.c.l.b16 %v269
        %v1053 = vunpack.c.l.b16 %v270
        %v1054 = vunpack.c.l.b16 %v271
        %v1055 = vunpack.c.l.b16 %v272
        %v1056 = vunpack.c.l.b16 %v273
        %v1057 = vunpack.c.l.b16 %v274
        %v1058 = vunpack.c.l.b16 %v275
        %v1059 = vunpack.c.l.b16 %v276
        %v1060 = vunpack.c.l.b16 %v277
        %v1061 = vunpack.c.l.b16 %v278
        %v1062 = vunpack.c.l.b16 %v279
        %v1063 = vunpack.c.l.b16 %v280
        %v1064 = vunpack.c.l.b16 %v281
        %v1065 = vunpack.c.l.b16 %v282
        %v1066 = vunpack.c.l.b16 %v283
        %v1067 = vunpack.c.l.b16 %v284
        %v1068 = vpack.c.b16 %v1053, %v1052
        %v1069 = vpack.c.b16 %v1055, %v1054
        %v1070 = vpack.c.b16 %v1057, %v1056
        %v1071 = vpack.c.b16 %v1059, %v1058
        %v1072 = vpack.c.b16 %v1061, %v1060
        %v1073 = vpack.c.b16 %v1063, %v1062
        %v1074 = vpack.c.b16 %v1065, %v1064
        %v1075 = vpack.c.b16 %v1067, %v1066
        %v1100 = vunpack.c.l.b16 %v301
        %v1101 = vunpack.c.l.b16 %v302
        %v1102 = vunpack.c.l.b16 %v303
        %v1103 = vunpack.c.l.b16 %v304
        %v1104 = vunpack.c.l.b16 %v305
        %v1105 = vunpack.c.l.b16 %v306
        %v1106 = vunpack.c.l.b16 %v307
        %v1107 = vunpack.c.l.b16 %v308
        %v1108 = vunpack.c.l.b16 %v309
        %v1109 = vunpack.c.l.b16 %v310
        %v1110 = vunpack.c.l.b16 %v311
        %v1111 = vunpack.c.l.b16 %v312
        %v1112 = vunpack.c.l.b16 %v313
        %v1113 = vunpack.c.l.b16 %v314
        %v1114 = vunpack.c.l.b16 %v315
        %v1115 = vunpack.c.l.b16 %v316
        %v1116 = vpack.c.b16 %v1101, %v1100
        %v1117 = vpack.c.b16 %v1103, %v1102
        %v1118 = vpack.c.b16 %v1105, %v1104
        %v1119 = vpack.c.b16 %v1107, %v1106
        %v1120 = vpack.c.b16 %v1109, %v1108
        %v1121 = vpack.c.b16 %v1111, %v1110
        %v1122 = vpack.c.b16 %v1113, %v1112
        %v1123 = vpack.c.b16 %v1115, %v1114
        %1132 = vmatprep.subr.bf16.mxu0 0
        %1133 = vmatpush1.bf16.msra.mxu0 %v1116
        %1134 = vmatprep.subr.bf16.mxu0 0
        %1135 = vmatpush1.bf16.msra.mxu0 %v1117
        %1136 = vmatprep.subr.bf16.mxu0 0
        %1137 = vmatpush1.bf16.msra.mxu0 %v1118
        %1138 = vmatprep.subr.bf16.mxu0 0
        %1139 = vmatpush1.bf16.msra.mxu0 %v1119
        %1140 = vmatprep.subr.bf16.mxu0 0
        %1141 = vmatpush1.bf16.msra.mxu0 %v1120
        %1142 = vmatprep.subr.bf16.mxu0 0
        %1143 = vmatpush1.bf16.msra.mxu0 %v1121
        %1144 = vmatprep.subr.bf16.mxu0 0
        %1145 = vmatpush1.bf16.msra.mxu0 %v1122
        %1146 = vmatprep.subr.bf16.mxu0 0
        %1147 = vmatpush1.bf16.msra.mxu0 %v1123
        %1148 = vmatprep.subr.bf16.mxu0 0
        %1149 = vmatpush1.bf16.msra.mxu0 0
        %1150 = vmatprep.subr.bf16.mxu0 0
        %1151 = vmatpush1.bf16.msra.mxu0 0
        %1152 = vmatprep.subr.bf16.mxu0 0
        %1153 = vmatpush1.bf16.msra.mxu0 0
        %1154 = vmatprep.subr.bf16.mxu0 0
        %1155 = vmatpush1.bf16.msra.mxu0 0
        %1156 = vmatprep.subr.bf16.mxu0 0
        %1157 = vmatpush1.bf16.msra.mxu0 0
        %1158 = vmatprep.subr.bf16.mxu0 0
        %1159 = vmatpush1.bf16.msra.mxu0 0
        %1160 = vmatprep.subr.bf16.mxu0 0
        %1161 = vmatpush1.bf16.msra.mxu0 0
        %1162 = vmatprep.subr.bf16.mxu0 0
        %1163 = vmatpush1.bf16.msra.mxu0 0
        %1164 = vmatprep.mubr.bf16.mxu0 0
        %1165 = vmatmul.mubr.bf16.gmra.mrb[0].mxu0 %v1068
        %v1166 = vpop.f32.mrb[0].mxu0
        %v1167 = vadd.f32 %v982, %v1166
        %v1168 = vpop.f32.mrb[0].mxu0
        %v1169 = vpop.f32.mrb[0].mxu0
        %v1170 = vpop.f32.mrb[0].mxu0
        %1171 = vmatprep.mubr.bf16.mxu0 0
        %1172 = vmatmul.mubr.bf16.gmra.mrb[0].mxu0 %v1069
        %v1173 = vpop.f32.mrb[0].mxu0
        %v1174 = vadd.f32 %v989, %v1173
        %v1175 = vpop.f32.mrb[0].mxu0
        %v1176 = vpop.f32.mrb[0].mxu0
        %v1177 = vpop.f32.mrb[0].mxu0
        %1178 = vmatprep.mubr.bf16.mxu0 0
        %1179 = vmatmul.mubr.bf16.gmra.mrb[0].mxu0 %v1070
        %v1180 = vpop.f32.mrb[0].mxu0
        %v1181 = vadd.f32 %v996, %v1180
        %v1182 = vpop.f32.mrb[0].mxu0
        %v1183 = vpop.f32.mrb[0].mxu0
        %v1184 = vpop.f32.mrb[0].mxu0
        %1185 = vmatprep.mubr.bf16.mxu0 0
        %1186 = vmatmul.mubr.bf16.gmra.mrb[0].mxu0 %v1071
        %v1187 = vpop.f32.mrb[0].mxu0
        %v1188 = vadd.f32 %v1003, %v1187
        %v1189 = vpop.f32.mrb[0].mxu0
        %v1190 = vpop.f32.mrb[0].mxu0
        %v1191 = vpop.f32.mrb[0].mxu0
        %1192 = vmatprep.mubr.bf16.mxu0 0
        %1193 = vmatmul.mubr.bf16.gmra.mrb[0].mxu0 %v1072
        %v1194 = vpop.f32.mrb[0].mxu0
        %v1195 = vadd.f32 %v1010, %v1194
        %v1196 = vpop.f32.mrb[0].mxu0
        %v1197 = vpop.f32.mrb[0].mxu0
        %v1198 = vpop.f32.mrb[0].mxu0
        %1199 = vmatprep.mubr.bf16.mxu0 0
        %1200 = vmatmul.mubr.bf16.gmra.mrb[0].mxu0 %v1073
        %v1201 = vpop.f32.mrb[0].mxu0
        %v1202 = vadd.f32 %v1017, %v1201
        %v1203 = vpop.f32.mrb[0].mxu0
        %v1204 = vpop.f32.mrb[0].mxu0
        %v1205 = vpop.f32.mrb[0].mxu0
        %1206 = vmatprep.mubr.bf16.mxu0 0
        %1207 = vmatmul.mubr.bf16.gmra.mrb[0].mxu0 %v1074
        %v1208 = vpop.f32.mrb[0].mxu0
        %v1209 = vadd.f32 %v1024, %v1208
        %v1210 = vpop.f32.mrb[0].mxu0
        %v1211 = vpop.f32.mrb[0].mxu0
        %v1212 = vpop.f32.mrb[0].mxu0
        %1213 = vmatprep.mubr.bf16.mxu0 0
        %1214 = vmatmul.mubr.bf16.gmra.mrb[0].mxu0 %v1075
        %v1215 = vpop.f32.mrb[0].mxu0
        %v1216 = vadd.f32 %v1031, %v1215
        %v1217 = vpop.f32.mrb[0].mxu0
        %v1218 = vpop.f32.mrb[0].mxu0
        %v1219 = vpop.f32.mrb[0].mxu0
        %1220 = vdwg.mxu0
        %s1221 = scalar_lea.vmem %s250, 8
        %v1222 = vld [vmem:[%s1221] sm:$0xf]
        %v1223 = vld [vmem:[%s1221 + $0x4] sm:$0xf]
        %v1224 = vld [vmem:[%s1221 + $0x8] sm:$0xf]
        %v1225 = vld [vmem:[%s1221 + $0xc] sm:$0xf]
        %v1226 = vld [vmem:[%s1221 + $0x10] sm:$0xf]
        %v1227 = vld [vmem:[%s1221 + $0x14] sm:$0xf]
        %v1228 = vld [vmem:[%s1221 + $0x18] sm:$0xf]
        %v1229 = vld [vmem:[%s1221 + $0x1c] sm:$0xf]
        %v1230 = vld [vmem:[%s1221 + $0x20] sm:$0xf]
        %v1231 = vld [vmem:[%s1221 + $0x24] sm:$0xf]
        %v1232 = vld [vmem:[%s1221 + $0x28] sm:$0xf]
        %v1233 = vld [vmem:[%s1221 + $0x2c] sm:$0xf]
        %v1234 = vld [vmem:[%s1221 + $0x30] sm:$0xf]
        %v1235 = vld [vmem:[%s1221 + $0x34] sm:$0xf]
        %v1236 = vld [vmem:[%s1221 + $0x38] sm:$0xf]
        %v1237 = vld [vmem:[%s1221 + $0x3c] sm:$0xf]
        %s1238 = scalar_lea.vmem %s250, 80
        %v1239 = vld [vmem:[%s1238] sm:$0xf]
        %v1240 = vld [vmem:[%s1238 + $0x4] sm:$0xf]
        %v1241 = vld [vmem:[%s1238 + $0x8] sm:$0xf]
        %v1242 = vld [vmem:[%s1238 + $0xc] sm:$0xf]
        %v1243 = vld [vmem:[%s1238 + $0x10] sm:$0xf]
        %v1244 = vld [vmem:[%s1238 + $0x14] sm:$0xf]
        %v1245 = vld [vmem:[%s1238 + $0x18] sm:$0xf]
        %v1246 = vld [vmem:[%s1238 + $0x1c] sm:$0xf]
        %v1247 = vld [vmem:[%s1238 + $0x20] sm:$0xf]
        %v1248 = vld [vmem:[%s1238 + $0x24] sm:$0xf]
        %v1249 = vld [vmem:[%s1238 + $0x28] sm:$0xf]
        %v1250 = vld [vmem:[%s1238 + $0x2c] sm:$0xf]
        %v1251 = vld [vmem:[%s1238 + $0x30] sm:$0xf]
        %v1252 = vld [vmem:[%s1238 + $0x34] sm:$0xf]
        %v1253 = vld [vmem:[%s1238 + $0x38] sm:$0xf]
        %v1254 = vld [vmem:[%s1238 + $0x3c] sm:$0xf]
        %s1255 = scalar_lea.vmem %s1, 256
        %v1256 = vld [vmem:[%s1255] sm:$0xff]
        %v1257 = vld [vmem:[%s1255 + $0x8] sm:$0xff]
        %v1258 = vld [vmem:[%s1255 + $0x10] sm:$0xff]
        %v1259 = vld [vmem:[%s1255 + $0x18] sm:$0xff]
        %v1260 = vld [vmem:[%s1255 + $0x20] sm:$0xff]
        %v1261 = vld [vmem:[%s1255 + $0x28] sm:$0xff]
        %v1262 = vld [vmem:[%s1255 + $0x30] sm:$0xff]
        %v1263 = vld [vmem:[%s1255 + $0x38] sm:$0xff]
        %v1264 = vld [vmem:[%s1255 + $0x40] sm:$0xff]
        %v1265 = vld [vmem:[%s1255 + $0x48] sm:$0xff]
        %v1266 = vld [vmem:[%s1255 + $0x50] sm:$0xff]
        %v1267 = vld [vmem:[%s1255 + $0x58] sm:$0xff]
        %v1268 = vld [vmem:[%s1255 + $0x60] sm:$0xff]
        %v1269 = vld [vmem:[%s1255 + $0x68] sm:$0xff]
        %v1270 = vld [vmem:[%s1255 + $0x70] sm:$0xff]
        %v1271 = vld [vmem:[%s1255 + $0x78] sm:$0xff]
        %v1288 = vunpack.c.l.b16 %v1222
        %v1289 = vunpack.c.l.b16 %v1223
        %v1290 = vunpack.c.l.b16 %v1224
        %v1291 = vunpack.c.l.b16 %v1225
        %v1292 = vunpack.c.l.b16 %v1226
        %v1293 = vunpack.c.l.b16 %v1227
        %v1294 = vunpack.c.l.b16 %v1228
        %v1295 = vunpack.c.l.b16 %v1229
        %v1296 = vunpack.c.l.b16 %v1230
        %v1297 = vunpack.c.l.b16 %v1231
        %v1298 = vunpack.c.l.b16 %v1232
        %v1299 = vunpack.c.l.b16 %v1233
        %v1300 = vunpack.c.l.b16 %v1234
        %v1301 = vunpack.c.l.b16 %v1235
        %v1302 = vunpack.c.l.b16 %v1236
        %v1303 = vunpack.c.l.b16 %v1237
        %v1304 = vpack.c.b16 %v1289, %v1288
        %v1305 = vpack.c.b16 %v1291, %v1290
        %v1306 = vpack.c.b16 %v1293, %v1292
        %v1307 = vpack.c.b16 %v1295, %v1294
        %v1308 = vpack.c.b16 %v1297, %v1296
        %v1309 = vpack.c.b16 %v1299, %v1298
        %v1310 = vpack.c.b16 %v1301, %v1300
        %v1311 = vpack.c.b16 %v1303, %v1302
        %v1336 = vunpack.c.l.b16 %v1256
        %v1337 = vunpack.c.h.b16 %v1256
        %v1338 = vunpack.c.l.b16 %v1257
        %v1339 = vunpack.c.h.b16 %v1257
        %v1340 = vunpack.c.l.b16 %v1258
        %v1341 = vunpack.c.h.b16 %v1258
        %v1342 = vunpack.c.l.b16 %v1259
        %v1343 = vunpack.c.h.b16 %v1259
        %v1344 = vunpack.c.l.b16 %v1260
        %v1345 = vunpack.c.h.b16 %v1260
        %v1346 = vunpack.c.l.b16 %v1261
        %v1347 = vunpack.c.h.b16 %v1261
        %v1348 = vunpack.c.l.b16 %v1262
        %v1349 = vunpack.c.h.b16 %v1262
        %v1350 = vunpack.c.l.b16 %v1263
        %v1351 = vunpack.c.h.b16 %v1263
        %v1352 = vunpack.c.l.b16 %v1264
        %v1353 = vunpack.c.h.b16 %v1264
        %v1354 = vunpack.c.l.b16 %v1265
        %v1355 = vunpack.c.h.b16 %v1265
        %v1356 = vunpack.c.l.b16 %v1266
        %v1357 = vunpack.c.h.b16 %v1266
        %v1358 = vunpack.c.l.b16 %v1267
        %v1359 = vunpack.c.h.b16 %v1267
        %v1360 = vunpack.c.l.b16 %v1268
        %v1361 = vunpack.c.h.b16 %v1268
        %v1362 = vunpack.c.l.b16 %v1269
        %v1363 = vunpack.c.h.b16 %v1269
        %v1364 = vunpack.c.l.b16 %v1270
        %v1365 = vunpack.c.h.b16 %v1270
        %v1366 = vunpack.c.l.b16 %v1271
        %v1367 = vunpack.c.h.b16 %v1271
        %v1368 = vpack.c.b16 %v1338, %v1336
        %v1369 = vpack.c.b16 %v1339, %v1337
        %v1370 = vpack.c.b16 %v1342, %v1340
        %v1371 = vpack.c.b16 %v1343, %v1341
        %v1372 = vpack.c.b16 %v1346, %v1344
        %v1373 = vpack.c.b16 %v1347, %v1345
        %v1374 = vpack.c.b16 %v1350, %v1348
        %v1375 = vpack.c.b16 %v1351, %v1349
        %v1376 = vpack.c.b16 %v1354, %v1352
        %v1377 = vpack.c.b16 %v1355, %v1353
        %v1378 = vpack.c.b16 %v1358, %v1356
        %v1379 = vpack.c.b16 %v1359, %v1357
        %v1380 = vpack.c.b16 %v1362, %v1360
        %v1381 = vpack.c.b16 %v1363, %v1361
        %v1382 = vpack.c.b16 %v1366, %v1364
        %v1383 = vpack.c.b16 %v1367, %v1365
        %1400 = vmatprep.subr.bf16.mxu0 %v1369
        %1401 = vmatpush1.bf16.msra.mxu0 %v1368
        %1402 = vmatprep.subr.bf16.mxu0 %v1371
        %1403 = vmatpush1.bf16.msra.mxu0 %v1370
        %1404 = vmatprep.subr.bf16.mxu0 %v1373
        %1405 = vmatpush1.bf16.msra.mxu0 %v1372
        %1406 = vmatprep.subr.bf16.mxu0 %v1375
        %1407 = vmatpush1.bf16.msra.mxu0 %v1374
        %1408 = vmatprep.subr.bf16.mxu0 %v1377
        %1409 = vmatpush1.bf16.msra.mxu0 %v1376
        %1410 = vmatprep.subr.bf16.mxu0 %v1379
        %1411 = vmatpush1.bf16.msra.mxu0 %v1378
        %1412 = vmatprep.subr.bf16.mxu0 %v1381
        %1413 = vmatpush1.bf16.msra.mxu0 %v1380
        %1414 = vmatprep.subr.bf16.mxu0 %v1383
        %1415 = vmatpush1.bf16.msra.mxu0 %v1382
        %1416 = vmatprep.subr.bf16.mxu0 0
        %1417 = vmatpush1.bf16.msra.mxu0 0
        %1418 = vmatprep.subr.bf16.mxu0 0
        %1419 = vmatpush1.bf16.msra.mxu0 0
        %1420 = vmatprep.subr.bf16.mxu0 0
        %1421 = vmatpush1.bf16.msra.mxu0 0
        %1422 = vmatprep.subr.bf16.mxu0 0
        %1423 = vmatpush1.bf16.msra.mxu0 0
        %1424 = vmatprep.subr.bf16.mxu0 0
        %1425 = vmatpush1.bf16.msra.mxu0 0
        %1426 = vmatprep.subr.bf16.mxu0 0
        %1427 = vmatpush1.bf16.msra.mxu0 0
        %1428 = vmatprep.subr.bf16.mxu0 0
        %1429 = vmatpush1.bf16.msra.mxu0 0
        %1430 = vmatprep.subr.bf16.mxu0 0
        %1431 = vmatpush1.bf16.msra.mxu0 0
        %1432 = vmatprep.mubr.bf16.mxu0 0
        %1433 = vmatmul.mubr.bf16.gmra.mrb[0].mxu0 %v1304
        %v1434 = vpop.f32.mrb[0].mxu0
        %v1435 = vadd.f32 0.0, %v1434
        %v1436 = vpop.f32.mrb[0].mxu0
        %v1437 = vadd.f32 0.0, %v1436
        %v1438 = vpop.f32.mrb[0].mxu0
        %v1439 = vpop.f32.mrb[0].mxu0
        %v1440 = vadd.f32 0.0, %v1439
        %1441 = vmatprep.mubr.bf16.mxu0 0
        %1442 = vmatmul.mubr.bf16.gmra.mrb[0].mxu0 %v1305
        %v1443 = vpop.f32.mrb[0].mxu0
        %v1444 = vadd.f32 0.0, %v1443
        %v1445 = vpop.f32.mrb[0].mxu0
        %v1446 = vadd.f32 0.0, %v1445
        %v1447 = vpop.f32.mrb[0].mxu0
        %v1448 = vpop.f32.mrb[0].mxu0
        %v1449 = vadd.f32 0.0, %v1448
        %1450 = vmatprep.mubr.bf16.mxu0 0
        %1451 = vmatmul.mubr.bf16.gmra.mrb[0].mxu0 %v1306
        %v1452 = vpop.f32.mrb[0].mxu0
        %v1453 = vadd.f32 0.0, %v1452
        %v1454 = vpop.f32.mrb[0].mxu0
        %v1455 = vadd.f32 0.0, %v1454
        %v1456 = vpop.f32.mrb[0].mxu0
        %v1457 = vpop.f32.mrb[0].mxu0
        %v1458 = vadd.f32 0.0, %v1457
        %1459 = vmatprep.mubr.bf16.mxu0 0
        %1460 = vmatmul.mubr.bf16.gmra.mrb[0].mxu0 %v1307
        %v1461 = vpop.f32.mrb[0].mxu0
        %v1462 = vadd.f32 0.0, %v1461
        %v1463 = vpop.f32.mrb[0].mxu0
        %v1464 = vadd.f32 0.0, %v1463
        %v1465 = vpop.f32.mrb[0].mxu0
        %v1466 = vpop.f32.mrb[0].mxu0
        %v1467 = vadd.f32 0.0, %v1466
        %1468 = vmatprep.mubr.bf16.mxu0 0
        %1469 = vmatmul.mubr.bf16.gmra.mrb[0].mxu0 %v1308
        %v1470 = vpop.f32.mrb[0].mxu0
        %v1471 = vadd.f32 0.0, %v1470
        %v1472 = vpop.f32.mrb[0].mxu0
        %v1473 = vadd.f32 0.0, %v1472
        %v1474 = vpop.f32.mrb[0].mxu0
        %v1475 = vpop.f32.mrb[0].mxu0
        %v1476 = vadd.f32 0.0, %v1475
        %1477 = vmatprep.mubr.bf16.mxu0 0
        %1478 = vmatmul.mubr.bf16.gmra.mrb[0].mxu0 %v1309
        %v1479 = vpop.f32.mrb[0].mxu0
        %v1480 = vadd.f32 0.0, %v1479
        %v1481 = vpop.f32.mrb[0].mxu0
        %v1482 = vadd.f32 0.0, %v1481
        %v1483 = vpop.f32.mrb[0].mxu0
        %v1484 = vpop.f32.mrb[0].mxu0
        %v1485 = vadd.f32 0.0, %v1484
        %1486 = vmatprep.mubr.bf16.mxu0 0
        %1487 = vmatmul.mubr.bf16.gmra.mrb[0].mxu0 %v1310
        %v1488 = vpop.f32.mrb[0].mxu0
        %v1489 = vadd.f32 0.0, %v1488
        %v1490 = vpop.f32.mrb[0].mxu0
        %v1491 = vadd.f32 0.0, %v1490
        %v1492 = vpop.f32.mrb[0].mxu0
        %v1493 = vpop.f32.mrb[0].mxu0
        %v1494 = vadd.f32 0.0, %v1493
        %1495 = vmatprep.mubr.bf16.mxu0 0
        %1496 = vmatmul.mubr.bf16.gmra.mrb[0].mxu0 %v1311
        %v1497 = vpop.f32.mrb[0].mxu0
        %v1498 = vadd.f32 0.0, %v1497
        %v1499 = vpop.f32.mrb[0].mxu0
        %v1500 = vadd.f32 0.0, %v1499
        %v1501 = vpop.f32.mrb[0].mxu0
        %v1502 = vpop.f32.mrb[0].mxu0
        %v1503 = vadd.f32 0.0, %v1502
        %1504 = vdwg.mxu0
        %v1505 = vadd.f32 %v764, %v1435
        %v1506 = vadd.f32 %v766, %v1437
        %v1507 = vadd.f32 %v769, %v1440
        %v1508 = vadd.f32 %v773, %v1444
        %v1509 = vadd.f32 %v775, %v1446
        %v1510 = vadd.f32 %v778, %v1449
        %v1511 = vadd.f32 %v782, %v1453
        %v1512 = vadd.f32 %v784, %v1455
        %v1513 = vadd.f32 %v787, %v1458
        %v1514 = vadd.f32 %v791, %v1462
        %v1515 = vadd.f32 %v793, %v1464
        %v1516 = vadd.f32 %v796, %v1467
        %v1517 = vadd.f32 %v800, %v1471
        %v1518 = vadd.f32 %v802, %v1473
        %v1519 = vadd.f32 %v805, %v1476
        %v1520 = vadd.f32 %v809, %v1480
        %v1521 = vadd.f32 %v811, %v1482
        %v1522 = vadd.f32 %v814, %v1485
        %v1523 = vadd.f32 %v818, %v1489
        %v1524 = vadd.f32 %v820, %v1491
        %v1525 = vadd.f32 %v823, %v1494
        %v1526 = vadd.f32 %v827, %v1498
        %v1527 = vadd.f32 %v829, %v1500
        %v1528 = vadd.f32 %v832, %v1503
        %s1529 = scalar_lea.vmem %s2, 128
        %v1530 = vld [vmem:[%s1529] sm:$0xf]
        %v1531 = vld [vmem:[%s1529 + $0x4] sm:$0xf]
        %v1532 = vld [vmem:[%s1529 + $0x8] sm:$0xf]
        %v1533 = vld [vmem:[%s1529 + $0xc] sm:$0xf]
        %v1534 = vld [vmem:[%s1529 + $0x10] sm:$0xf]
        %v1535 = vld [vmem:[%s1529 + $0x14] sm:$0xf]
        %v1536 = vld [vmem:[%s1529 + $0x18] sm:$0xf]
        %v1537 = vld [vmem:[%s1529 + $0x1c] sm:$0xf]
        %v1538 = vld [vmem:[%s1529 + $0x20] sm:$0xf]
        %v1539 = vld [vmem:[%s1529 + $0x24] sm:$0xf]
        %v1540 = vld [vmem:[%s1529 + $0x28] sm:$0xf]
        %v1541 = vld [vmem:[%s1529 + $0x2c] sm:$0xf]
        %v1542 = vld [vmem:[%s1529 + $0x30] sm:$0xf]
        %v1543 = vld [vmem:[%s1529 + $0x34] sm:$0xf]
        %v1544 = vld [vmem:[%s1529 + $0x38] sm:$0xf]
        %v1545 = vld [vmem:[%s1529 + $0x3c] sm:$0xf]
        %v1562 = vunpack.c.l.b16 %v1239
        %v1563 = vunpack.c.l.b16 %v1240
        %v1564 = vunpack.c.l.b16 %v1241
        %v1565 = vunpack.c.l.b16 %v1242
        %v1566 = vunpack.c.l.b16 %v1243
        %v1567 = vunpack.c.l.b16 %v1244
        %v1568 = vunpack.c.l.b16 %v1245
        %v1569 = vunpack.c.l.b16 %v1246
        %v1570 = vunpack.c.l.b16 %v1247
        %v1571 = vunpack.c.l.b16 %v1248
        %v1572 = vunpack.c.l.b16 %v1249
        %v1573 = vunpack.c.l.b16 %v1250
        %v1574 = vunpack.c.l.b16 %v1251
        %v1575 = vunpack.c.l.b16 %v1252
        %v1576 = vunpack.c.l.b16 %v1253
        %v1577 = vunpack.c.l.b16 %v1254
        %v1578 = vpack.c.b16 %v1563, %v1562
        %v1579 = vpack.c.b16 %v1565, %v1564
        %v1580 = vpack.c.b16 %v1567, %v1566
        %v1581 = vpack.c.b16 %v1569, %v1568
        %v1582 = vpack.c.b16 %v1571, %v1570
        %v1583 = vpack.c.b16 %v1573, %v1572
        %v1584 = vpack.c.b16 %v1575, %v1574
        %v1585 = vpack.c.b16 %v1577, %v1576
        %v1610 = vunpack.c.l.b16 %v1530
        %v1611 = vunpack.c.l.b16 %v1531
        %v1612 = vunpack.c.l.b16 %v1532
        %v1613 = vunpack.c.l.b16 %v1533
        %v1614 = vunpack.c.l.b16 %v1534
        %v1615 = vunpack.c.l.b16 %v1535
        %v1616 = vunpack.c.l.b16 %v1536
        %v1617 = vunpack.c.l.b16 %v1537
        %v1618 = vunpack.c.l.b16 %v1538
        %v1619 = vunpack.c.l.b16 %v1539
        %v1620 = vunpack.c.l.b16 %v1540
        %v1621 = vunpack.c.l.b16 %v1541
        %v1622 = vunpack.c.l.b16 %v1542
        %v1623 = vunpack.c.l.b16 %v1543
        %v1624 = vunpack.c.l.b16 %v1544
        %v1625 = vunpack.c.l.b16 %v1545
        %v1626 = vpack.c.b16 %v1611, %v1610
        %v1627 = vpack.c.b16 %v1613, %v1612
        %v1628 = vpack.c.b16 %v1615, %v1614
        %v1629 = vpack.c.b16 %v1617, %v1616
        %v1630 = vpack.c.b16 %v1619, %v1618
        %v1631 = vpack.c.b16 %v1621, %v1620
        %v1632 = vpack.c.b16 %v1623, %v1622
        %v1633 = vpack.c.b16 %v1625, %v1624
        %1642 = vmatprep.subr.bf16.mxu0 0
        %1643 = vmatpush1.bf16.msra.mxu0 %v1626
        %1644 = vmatprep.subr.bf16.mxu0 0
        %1645 = vmatpush1.bf16.msra.mxu0 %v1627
        %1646 = vmatprep.subr.bf16.mxu0 0
        %1647 = vmatpush1.bf16.msra.mxu0 %v1628
        %1648 = vmatprep.subr.bf16.mxu0 0
        %1649 = vmatpush1.bf16.msra.mxu0 %v1629
        %1650 = vmatprep.subr.bf16.mxu0 0
        %1651 = vmatpush1.bf16.msra.mxu0 %v1630
        %1652 = vmatprep.subr.bf16.mxu0 0
        %1653 = vmatpush1.bf16.msra.mxu0 %v1631
        %1654 = vmatprep.subr.bf16.mxu0 0
        %1655 = vmatpush1.bf16.msra.mxu0 %v1632
        %1656 = vmatprep.subr.bf16.mxu0 0
        %1657 = vmatpush1.bf16.msra.mxu0 %v1633
        %1658 = vmatprep.subr.bf16.mxu0 0
        %1659 = vmatpush1.bf16.msra.mxu0 0
        %1660 = vmatprep.subr.bf16.mxu0 0
        %1661 = vmatpush1.bf16.msra.mxu0 0
        %1662 = vmatprep.subr.bf16.mxu0 0
        %1663 = vmatpush1.bf16.msra.mxu0 0
        %1664 = vmatprep.subr.bf16.mxu0 0
        %1665 = vmatpush1.bf16.msra.mxu0 0
        %1666 = vmatprep.subr.bf16.mxu0 0
        %1667 = vmatpush1.bf16.msra.mxu0 0
        %1668 = vmatprep.subr.bf16.mxu0 0
        %1669 = vmatpush1.bf16.msra.mxu0 0
        %1670 = vmatprep.subr.bf16.mxu0 0
        %1671 = vmatpush1.bf16.msra.mxu0 0
        %1672 = vmatprep.subr.bf16.mxu0 0
        %1673 = vmatpush1.bf16.msra.mxu0 0
        %1674 = vmatprep.mubr.bf16.mxu0 0
        %1675 = vmatmul.mubr.bf16.gmra.mrb[0].mxu0 %v1578
        %v1676 = vpop.f32.mrb[0].mxu0
        %v1677 = vadd.f32 0.0, %v1676
        %v1678 = vpop.f32.mrb[0].mxu0
        %v1679 = vpop.f32.mrb[0].mxu0
        %v1680 = vpop.f32.mrb[0].mxu0
        %1681 = vmatprep.mubr.bf16.mxu0 0
        %1682 = vmatmul.mubr.bf16.gmra.mrb[0].mxu0 %v1579
        %v1683 = vpop.f32.mrb[0].mxu0
        %v1684 = vadd.f32 0.0, %v1683
        %v1685 = vpop.f32.mrb[0].mxu0
        %v1686 = vpop.f32.mrb[0].mxu0
        %v1687 = vpop.f32.mrb[0].mxu0
        %1688 = vmatprep.mubr.bf16.mxu0 0
        %1689 = vmatmul.mubr.bf16.gmra.mrb[0].mxu0 %v1580
        %v1690 = vpop.f32.mrb[0].mxu0
        %v1691 = vadd.f32 0.0, %v1690
        %v1692 = vpop.f32.mrb[0].mxu0
        %v1693 = vpop.f32.mrb[0].mxu0
        %v1694 = vpop.f32.mrb[0].mxu0
        %1695 = vmatprep.mubr.bf16.mxu0 0
        %1696 = vmatmul.mubr.bf16.gmra.mrb[0].mxu0 %v1581
        %v1697 = vpop.f32.mrb[0].mxu0
        %v1698 = vadd.f32 0.0, %v1697
        %v1699 = vpop.f32.mrb[0].mxu0
        %v1700 = vpop.f32.mrb[0].mxu0
        %v1701 = vpop.f32.mrb[0].mxu0
        %1702 = vmatprep.mubr.bf16.mxu0 0
        %1703 = vmatmul.mubr.bf16.gmra.mrb[0].mxu0 %v1582
        %v1704 = vpop.f32.mrb[0].mxu0
        %v1705 = vadd.f32 0.0, %v1704
        %v1706 = vpop.f32.mrb[0].mxu0
        %v1707 = vpop.f32.mrb[0].mxu0
        %v1708 = vpop.f32.mrb[0].mxu0
        %1709 = vmatprep.mubr.bf16.mxu0 0
        %1710 = vmatmul.mubr.bf16.gmra.mrb[0].mxu0 %v1583
        %v1711 = vpop.f32.mrb[0].mxu0
        %v1712 = vadd.f32 0.0, %v1711
        %v1713 = vpop.f32.mrb[0].mxu0
        %v1714 = vpop.f32.mrb[0].mxu0
        %v1715 = vpop.f32.mrb[0].mxu0
        %1716 = vmatprep.mubr.bf16.mxu0 0
        %1717 = vmatmul.mubr.bf16.gmra.mrb[0].mxu0 %v1584
        %v1718 = vpop.f32.mrb[0].mxu0
        %v1719 = vadd.f32 0.0, %v1718
        %v1720 = vpop.f32.mrb[0].mxu0
        %v1721 = vpop.f32.mrb[0].mxu0
        %v1722 = vpop.f32.mrb[0].mxu0
        %1723 = vmatprep.mubr.bf16.mxu0 0
        %1724 = vmatmul.mubr.bf16.gmra.mrb[0].mxu0 %v1585
        %v1725 = vpop.f32.mrb[0].mxu0
        %v1726 = vadd.f32 0.0, %v1725
        %v1727 = vpop.f32.mrb[0].mxu0
        %v1728 = vpop.f32.mrb[0].mxu0
        %v1729 = vpop.f32.mrb[0].mxu0
        %1730 = vdwg.mxu0
        %v1731 = vadd.f32 %v1167, %v1677
        %v1732 = vadd.f32 %v1174, %v1684
        %v1733 = vadd.f32 %v1181, %v1691
        %v1734 = vadd.f32 %v1188, %v1698
        %v1735 = vadd.f32 %v1195, %v1705
        %v1736 = vadd.f32 %v1202, %v1712
        %v1737 = vadd.f32 %v1209, %v1719
        %v1738 = vadd.f32 %v1216, %v1726
        %v1739 = vadd.f32 %v1505, %v1731
        %v1740 = vadd.f32 %v1508, %v1732
        %v1741 = vadd.f32 %v1511, %v1733
        %v1742 = vadd.f32 %v1514, %v1734
        %v1743 = vadd.f32 %v1517, %v1735
        %v1744 = vadd.f32 %v1520, %v1736
        %v1745 = vadd.f32 %v1523, %v1737
        %v1746 = vadd.f32 %v1526, %v1738
        %vm1763 = vcmask 1046528
        %v1764 = vrot.slane %v1506, 1
        %v1765 = vrot.slane %v1507, 1
        %v1766 = vsel %vm1763, %v1764, %v1765
        %v1767 = vrot.slane %v1509, 1
        %v1768 = vrot.slane %v1510, 1
        %v1769 = vsel %vm1763, %v1767, %v1768
        %v1770 = vrot.slane %v1512, 1
        %v1771 = vrot.slane %v1513, 1
        %v1772 = vsel %vm1763, %v1770, %v1771
        %v1773 = vrot.slane %v1515, 1
        %v1774 = vrot.slane %v1516, 1
        %v1775 = vsel %vm1763, %v1773, %v1774
        %v1776 = vrot.slane %v1518, 1
        %v1777 = vrot.slane %v1519, 1
        %v1778 = vsel %vm1763, %v1776, %v1777
        %v1779 = vrot.slane %v1521, 1
        %v1780 = vrot.slane %v1522, 1
        %v1781 = vsel %vm1763, %v1779, %v1780
        %v1782 = vrot.slane %v1524, 1
        %v1783 = vrot.slane %v1525, 1
        %v1784 = vsel %vm1763, %v1782, %v1783
        %v1785 = vrot.slane %v1527, 1
        %v1786 = vrot.slane %v1528, 1
        %v1787 = vsel %vm1763, %v1785, %v1786
        %v1796 = vadd.f32 %v1739, %v1766
        %v1797 = vadd.f32 %v1740, %v1769
        %v1798 = vadd.f32 %v1741, %v1772
        %v1799 = vadd.f32 %v1742, %v1775
        %v1800 = vadd.f32 %v1743, %v1778
        %v1801 = vadd.f32 %v1744, %v1781
        %v1802 = vadd.f32 %v1745, %v1784
        %v1803 = vadd.f32 %v1746, %v1787
        %1804 = vadd.xlane.f32.xlu0 %v1796
        %v1805 = vpop.xlane.xlu0 %1804
        %1806 = vadd.xlane.f32.xlu0 %v1797
        %v1807 = vpop.xlane.xlu0 %1806
        %1808 = vadd.xlane.f32.xlu0 %v1798
        %v1809 = vpop.xlane.xlu0 %1808
        %1810 = vadd.xlane.f32.xlu0 %v1799
        %v1811 = vpop.xlane.xlu0 %1810
        %1812 = vadd.xlane.f32.xlu0 %v1800
        %v1813 = vpop.xlane.xlu0 %1812
        %1814 = vadd.xlane.f32.xlu0 %v1801
        %v1815 = vpop.xlane.xlu0 %1814
        %1816 = vadd.xlane.f32.xlu0 %v1802
        %v1817 = vpop.xlane.xlu0 %1816
        %1818 = vadd.xlane.f32.xlu0 %v1803
        %v1819 = vpop.xlane.xlu0 %1818
        %v1820 = vmul.f32 %v1796, %v1796
        %v1821 = vmul.f32 %v1797, %v1797
        %v1822 = vmul.f32 %v1798, %v1798
        %v1823 = vmul.f32 %v1799, %v1799
        %v1824 = vmul.f32 %v1800, %v1800
        %v1825 = vmul.f32 %v1801, %v1801
        %v1826 = vmul.f32 %v1802, %v1802
        %v1827 = vmul.f32 %v1803, %v1803
        %1828 = vadd.xlane.f32.xlu0 %v1820
        %v1829 = vpop.xlane.xlu0 %1828
        %1830 = vadd.xlane.f32.xlu0 %v1821
        %v1831 = vpop.xlane.xlu0 %1830
        %1832 = vadd.xlane.f32.xlu0 %v1822
        %v1833 = vpop.xlane.xlu0 %1832
        %1834 = vadd.xlane.f32.xlu0 %v1823
        %v1835 = vpop.xlane.xlu0 %1834
        %1836 = vadd.xlane.f32.xlu0 %v1824
        %v1837 = vpop.xlane.xlu0 %1836
        %1838 = vadd.xlane.f32.xlu0 %v1825
        %v1839 = vpop.xlane.xlu0 %1838
        %1840 = vadd.xlane.f32.xlu0 %v1826
        %v1841 = vpop.xlane.xlu0 %1840
        %1842 = vadd.xlane.f32.xlu0 %v1827
        %v1843 = vpop.xlane.xlu0 %1842
        %v1844 = vmul.f32 %v1805, 0.0078125
        %v1845 = vmul.f32 %v1807, 0.0078125
        %v1846 = vmul.f32 %v1809, 0.0078125
        %v1847 = vmul.f32 %v1811, 0.0078125
        %v1848 = vmul.f32 %v1813, 0.0078125
        %v1849 = vmul.f32 %v1815, 0.0078125
        %v1850 = vmul.f32 %v1817, 0.0078125
        %v1851 = vmul.f32 %v1819, 0.0078125
        %v1852 = vmul.f32 %v1829, 0.0078125
        %v1853 = vmul.f32 %v1831, 0.0078125
        %v1854 = vmul.f32 %v1833, 0.0078125
        %v1855 = vmul.f32 %v1835, 0.0078125
        %v1856 = vmul.f32 %v1837, 0.0078125
        %v1857 = vmul.f32 %v1839, 0.0078125
        %v1858 = vmul.f32 %v1841, 0.0078125
        %v1859 = vmul.f32 %v1843, 0.0078125
        %v1860 = vmul.f32 %v1844, %v1844
        %v1861 = vmul.f32 %v1845, %v1845
        %v1862 = vmul.f32 %v1846, %v1846
        %v1863 = vmul.f32 %v1847, %v1847
        %v1864 = vmul.f32 %v1848, %v1848
        %v1865 = vmul.f32 %v1849, %v1849
        %v1866 = vmul.f32 %v1850, %v1850
        %v1867 = vmul.f32 %v1851, %v1851
        %v1868 = vsub.f32 %v1852, %v1860
        %v1869 = vsub.f32 %v1853, %v1861
        %v1870 = vsub.f32 %v1854, %v1862
        %v1871 = vsub.f32 %v1855, %v1863
        %v1872 = vsub.f32 %v1856, %v1864
        %v1873 = vsub.f32 %v1857, %v1865
        %v1874 = vsub.f32 %v1858, %v1866
        %v1875 = vsub.f32 %v1859, %v1867
        %v1876 = vmax.f32 %v1868, 0.0
        %v1877 = vmax.f32 %v1869, 0.0
        %v1878 = vmax.f32 %v1870, 0.0
        %v1879 = vmax.f32 %v1871, 0.0
        %v1880 = vmax.f32 %v1872, 0.0
        %v1881 = vmax.f32 %v1873, 0.0
        %v1882 = vmax.f32 %v1874, 0.0
        %v1883 = vmax.f32 %v1875, 0.0
        %v1884 = vsub.f32 %v1796, %v1844
        %v1885 = vsub.f32 %v1797, %v1845
        %v1886 = vsub.f32 %v1798, %v1846
        %v1887 = vsub.f32 %v1799, %v1847
        %v1888 = vsub.f32 %v1800, %v1848
        %v1889 = vsub.f32 %v1801, %v1849
        %v1890 = vsub.f32 %v1802, %v1850
        %v1891 = vsub.f32 %v1803, %v1851
        %v1892 = vadd.f32 %v1876, 1e-05
        %v1893 = vadd.f32 %v1877, 1e-05
        %v1894 = vadd.f32 %v1878, 1e-05
        %v1895 = vadd.f32 %v1879, 1e-05
        %v1896 = vadd.f32 %v1880, 1e-05
        %v1897 = vadd.f32 %v1881, 1e-05
        %v1898 = vadd.f32 %v1882, 1e-05
        %v1899 = vadd.f32 %v1883, 1e-05
        %v1900 = vrsqrt.pop %v1892
        %v1901 = vrsqrt.pop %v1893
        %v1902 = vrsqrt.pop %v1894
        %v1903 = vrsqrt.pop %v1895
        %v1904 = vrsqrt.pop %v1896
        %v1905 = vrsqrt.pop %v1897
        %v1906 = vrsqrt.pop %v1898
        %v1907 = vrsqrt.pop %v1899
        %v1908 = vmul.f32 %v1884, %v1900
        %v1909 = vmul.f32 %v1885, %v1901
        %v1910 = vmul.f32 %v1886, %v1902
        %v1911 = vmul.f32 %v1887, %v1903
        %v1912 = vmul.f32 %v1888, %v1904
        %v1913 = vmul.f32 %v1889, %v1905
        %v1914 = vmul.f32 %v1890, %v1906
        %v1915 = vmul.f32 %v1891, %v1907
        %v1916 = vld [vmem:[%s3] sm:$0x1]
        %v1918 = vlaneseq
        %v1919 = vshrl.u32 %v1918, 7
        %v1920 = vsub.s32 0, %v1919
        %v1921 = vrot.slane %v1916, %v1920
        %v1923 = vmul.f32 %v1908, %v1921
        %v1924 = vmul.f32 %v1909, %v1921
        %v1925 = vmul.f32 %v1910, %v1921
        %v1926 = vmul.f32 %v1911, %v1921
        %v1927 = vmul.f32 %v1912, %v1921
        %v1928 = vmul.f32 %v1913, %v1921
        %v1929 = vmul.f32 %v1914, %v1921
        %v1930 = vmul.f32 %v1915, %v1921
        %v1931 = vld [vmem:[%s4] sm:$0x1]
        %v1933 = vlaneseq
        %v1934 = vshrl.u32 %v1933, 7
        %v1935 = vsub.s32 0, %v1934
        %v1936 = vrot.slane %v1931, %v1935
        %v1938 = vadd.f32 %v1923, %v1936
        %v1939 = vadd.f32 %v1924, %v1936
        %v1940 = vadd.f32 %v1925, %v1936
        %v1941 = vadd.f32 %v1926, %v1936
        %v1942 = vadd.f32 %v1927, %v1936
        %v1943 = vadd.f32 %v1928, %v1936
        %v1944 = vadd.f32 %v1929, %v1936
        %v1945 = vadd.f32 %v1930, %v1936
        %v1946 = vpack.c.bf16 %v1938, %v1938
        %v1947 = vpack.c.bf16 %v1939, %v1939
        %v1948 = vpack.c.bf16 %v1940, %v1940
        %v1949 = vpack.c.bf16 %v1941, %v1941
        %v1950 = vpack.c.bf16 %v1942, %v1942
        %v1951 = vpack.c.bf16 %v1943, %v1943
        %v1952 = vpack.c.bf16 %v1944, %v1944
        %v1953 = vpack.c.bf16 %v1945, %v1945
        %1954 = vst [vmem:[%s241] sm:$0xf] %v1946
        %1955 = vst [vmem:[%s241 + $0x4] sm:$0xf] %v1947
        %1956 = vst [vmem:[%s241 + $0x8] sm:$0xf] %v1948
        %1957 = vst [vmem:[%s241 + $0xc] sm:$0xf] %v1949
        %1958 = vst [vmem:[%s241 + $0x10] sm:$0xf] %v1950
        %1959 = vst [vmem:[%s241 + $0x14] sm:$0xf] %v1951
        %1960 = vst [vmem:[%s241 + $0x18] sm:$0xf] %v1952
        %1961 = vst [vmem:[%s241 + $0x1c] sm:$0xf] %v1953
        %s1962 = sand.u32 %s153, 1
        %s1963 = scalar_lea.sflag [#allocation3], %s1962
        %s1964 = sand.u32 %s153, 1
        %s1965 = smul.addr %s1964, 32
        %s1966 = scalar_lea.vmem [#allocation2], %s1965
        // Predicated region
        $region41: #{conv_downsampler.1} parent=39 // pred_check
          %p1967 = pneg %p163
        $region42: #{conv_downsampler.1} parent=39 // pred_check_branch
          %1969 = sbr.rel (%p1967) target = $region44
        $region43: #{conv_downsampler.1} parent=39 // pred_region
          %s1971 = ssub.s32 512, 512
          %1972 = vsyncadd %s1963, %s1971
          %s1973 = smul.addr %s24, 8
          %s1974 = smul.addr %s23, 8
          %s1975 = sadd.s32 %s1973, %s1974
          %s1976 = smul.addr %s1975, 64
          %s1977 = scalar_lea.hbm %s5, %s1976
          %s1978 = sshll.u32 %s1966, 4
          %s1979 = int_to_ptr.vmem [resolvable:$true] %s1978
          %1984 = dma.vmem_to_hbm [thread:$0]  %s1979, 512, %s1977, %s1963, 64, 64, 4
        $region44: #{conv_downsampler.1} parent=39 // pred_fallthru
          _
      $region40: #{conv_downsampler.1} parent=5 // pred_fallthru
        _
      %p1985 = scmp.le.s32.totalorder 2, %s14
      // Predicated region
      $region45: #{conv_downsampler.1} parent=5 // pred_check
        %p1986 = pneg %p1985
      $region46: #{conv_downsampler.1} parent=5 // pred_check_branch
        %1988 = sbr.rel (%p1986) target = $region48
      $region47: #{conv_downsampler.1} parent=5 // pred_region
        %s1989 = ssub.s32 %s14, 2
        // Predicated region
        $region49: #{conv_downsampler.1} parent=47 // pred_check
          %p1990 = pneg %p169
        $region50: #{conv_downsampler.1} parent=47 // pred_check_branch
          %1992 = sbr.rel (%p1990) target = $region52
        $region51: #{conv_downsampler.1} parent=47 // pred_region
          %s1993 = sand.u32 %s154, 1
          %s1994 = scalar_lea.sflag [#allocation3], %s1993
          %s1995 = sand.u32 %s154, 1
          %s1996 = smul.addr %s1995, 32
          %s1997 = scalar_lea.vmem [#allocation2], %s1996
          %1998 = dma.done %s1994, 512
        $region52: #{conv_downsampler.1} parent=47 // pred_fallthru
          _
      $region48: #{conv_downsampler.1} parent=5 // pred_fallthru
        _
    $region6: #{conv_downsampler.1} parent=1 // loop_footer
      %s18 = sadd.s32 1, %s14
    $region7: #{conv_downsampler.1} parent=1 // loop_footer_branch
      %13 = sbr.rel target = $region3
    $region8: #{conv_downsampler.1} parent=1 // loop_exit
      _
    %1999 = vsyncpa [#allocation3], 1
    %s2000 = scalar_lea.sflag [#allocation3], 1
    %2001 = vsyncpa %s2000, 1

</llo_original>
